<compile_context>
chip_gen: v7x
topology: tpu7x:2x2x1
jax: 0.10.0
libtpu: 0.0.40
codegen_flags: <defaults>
</compile_context>

<pallas_src>
import functools
import math

import jax
import jax.numpy as jnp
from jax.experimental import pallas as pl
from jax.experimental.pallas import tpu as pltpu

_MASK_VALUE = -1e30                                   # finite "-inf": no NaN if fully masked
_M_INIT = float(jnp.finfo(jnp.float32).min)


# ------------------------------- Pallas kernel -------------------------------

def _cross_attn_body(q_ref, k_ref, v_ref, wq_ref, bq_ref, wk_ref, bk_ref,
                     wv_ref, bv_ref, mask_ref, o_ref,
                     kproj_ref, vproj_ref, qs_ref, m_ref, l_ref, acc_ref,
                     *, scale, compute_dtype):
    cd = compute_dtype
    qi = pl.program_id(1)
    kvi = pl.program_id(2)
    bt, tq, d = q_ref.shape
    kv_tile = k_ref.shape[1]

    # ---- Project this K/V tile once per batch-tile (first q step) into scratch.
    @pl.when(qi == 0)
    def _():
        k2 = k_ref[...].reshape(bt * kv_tile, d)
        v2 = v_ref[...].reshape(bt * kv_tile, d)
        kp = jnp.dot(k2, wk_ref[...], preferred_element_type=jnp.float32) + bk_ref[...]
        vp = jnp.dot(v2, wv_ref[...], preferred_element_type=jnp.float32) + bv_ref[...]
        kproj_ref[kvi] = kp.reshape(bt, kv_tile, d).astype(cd)
        vproj_ref[kvi] = vp.reshape(bt, kv_tile, d).astype(cd)

    # ---- Project this Q tile once per (batch, q) step; fold 1/sqrt(d) onto q.
    #      Also (re)initialize the online-softmax statistics.
    @pl.when(kvi == 0)
    def _():
        q2 = q_ref[...].reshape(bt * tq, d)
        qp = jnp.dot(q2, wq_ref[...], preferred_element_type=jnp.float32) + bq_ref[...]
        qs_ref[...] = (qp * scale).reshape(bt, tq, d).astype(cd)
        m_ref[...] = jnp.full(m_ref.shape, _M_INIT, jnp.float32)
        l_ref[...] = jnp.zeros(l_ref.shape, jnp.float32)
        acc_ref[...] = jnp.zeros(acc_ref.shape, jnp.float32)

    # ---- Online-softmax update for this kv tile (batched MXU matmuls, f32 stats).
    k_t = kproj_ref[kvi]                                              # (bt, kv_tile, d)
    v_t = vproj_ref[kvi]
    s = jax.lax.dot_general(qs_ref[...], k_t,
                            dimension_numbers=(((2,), (2,)), ((0,), (0,))),
                            preferred_element_type=jnp.float32)       # (bt, tq, kv_tile)
    if mask_ref is not None:
        # (bt, 1, kv_tile) key-padding mask broadcast over query rows.
        s = jnp.where(mask_ref[...] == 0, _MASK_VALUE, s)
    m_prev = m_ref[...]
    m_new = jnp.maximum(m_prev, jnp.max(s, axis=-1, keepdims=True))
    alpha = jnp.exp(m_prev - m_new)
    p = jnp.exp(s - m_new)
    l_ref[...] = alpha * l_ref[...] + jnp.sum(p, axis=-1, keepdims=True)
    acc_ref[...] = alpha * acc_ref[...] + jax.lax.dot_general(
        p.astype(cd), v_t,
        dimension_numbers=(((2,), (1,)), ((0,), (0,))),
        preferred_element_type=jnp.float32)                           # (bt, tq, d)
    m_ref[...] = m_new

    # ---- Finalize: normalize (EUP reciprocal) + output projection.
    #      linears[-1] IS linears[2] in the 3-Linear reference: shares Wv / bv.
    @pl.when(kvi == pl.num_programs(2) - 1)
    def _():
        ctx = acc_ref[...] * pl.reciprocal(l_ref[...], approx=True)
        out = jnp.dot(ctx.astype(cd).reshape(bt * tq, d), wv_ref[...],
                      preferred_element_type=jnp.float32) + bv_ref[...]
        o_ref[...] = out.reshape(bt, tq, d).astype(o_ref.dtype)


def _kernel_masked(q_ref, k_ref, v_ref, wq, bq, wk, bk, wv, bv, mask_ref, o_ref,
                   kproj, vproj, qs, m, l, acc, *, scale, compute_dtype):
    _cross_attn_body(q_ref, k_ref, v_ref, wq, bq, wk, bk, wv, bv, mask_ref, o_ref,
                     kproj, vproj, qs, m, l, acc,
                     scale=scale, compute_dtype=compute_dtype)


def _kernel_nomask(q_ref, k_ref, v_ref, wq, bq, wk, bk, wv, bv, o_ref,
                   kproj, vproj, qs, m, l, acc, *, scale, compute_dtype):
    _cross_attn_body(q_ref, k_ref, v_ref, wq, bq, wk, bk, wv, bv, None, o_ref,
                     kproj, vproj, qs, m, l, acc,
                     scale=scale, compute_dtype=compute_dtype)


# ------------------------------ Pallas wrapper --------------------------------

def _pick_tile(total, candidates):
    for c in candidates:
        if total > c and total % c == 0:
            return c
    return total


def cross_attention_forward(params, query, key, value, mask=None, *,
                            compute_dtype=jnp.bfloat16):
    """Fused CrossAttention forward (layer_past=None path).

    query: (B, Lq, D); key/value: (B, Lk, D); mask: key-padding mask (B, Lk) or
    (B, 1, Lk), 1 = attend, 0 = masked.  Weights stored as (in, out) == torch W^T.
    """
    b, lq, d = query.shape
    lk = key.shape[1]
    scale = 1.0 / math.sqrt(d)
    cd = jnp.dtype(compute_dtype)
    out_dtype = query.dtype

    # ---- Shape-aware tile selection (bounded so it also fits v7x's 64 MiB VMEM).
    q_block = _pick_tile(lq, (512, 256, 128))
    kv_tile = _pick_tile(lk, (1024, 512, 256))
    nq, nkv = lq // q_block, lk // kv_tile

    # Batch tile: fill the MXU M dimension for small Lq (decode-like shapes).
    bt = 1
    if d % 128 == 0 and q_block % 8 == 0 and kv_tile % 8 == 0:
        for cand in (8, 4, 2):
            if (b % cand == 0 and cand * q_block <= 256
                    and cand * lk * d * cd.itemsize <= (8 << 20)):
                bt = cand
                break
    nb = b // bt

    # ---- Wrapper-side casts (once per call, not per grid step): halves weight and
    #      activation HBM bytes on the bf16 path.  Biases stay f32 (f32 accumulate).
    q_in, k_in, v_in = (x.astype(cd) for x in (query, key, value))
    wq, wk, wv = (params[n].astype(cd) for n in ("wq", "wk", "wv"))
    bq, bk, bv = (params[n].astype(jnp.float32) for n in ("bq", "bk", "bv"))

    # K/V blocks: for qi > 0 re-point at the last-fetched tile so the pipeline's
    # same-block-index check skips the redundant HBM re-fetch (the projected K/V
    # are already cached in VMEM scratch after the qi == 0 pass).
    if nq > 1:
        def kv_index(bi, qi, kvi):
            return (bi, jnp.where(qi == 0, kvi, nkv - 1), 0)
    else:
        def kv_index(bi, qi, kvi):
            return (bi, kvi, 0)

    in_specs = [
        pl.BlockSpec((bt, q_block, d), lambda bi, qi, kvi: (bi, qi, 0)),   # query
        pl.BlockSpec((bt, kv_tile, d), kv_index),                          # key
        pl.BlockSpec((bt, kv_tile, d), kv_index),                          # value
        pl.BlockSpec((d, d), lambda bi, qi, kvi: (0, 0)),                  # Wq
        pl.BlockSpec((1, d), lambda bi, qi, kvi: (0, 0)),                  # bq
        pl.BlockSpec((d, d), lambda bi, qi, kvi: (0, 0)),                  # Wk
        pl.BlockSpec((1, d), lambda bi, qi, kvi: (0, 0)),                  # bk
        pl.BlockSpec((d, d), lambda bi, qi, kvi: (0, 0)),                  # Wv (== out proj)
        pl.BlockSpec((1, d), lambda bi, qi, kvi: (0, 0)),                  # bv
    ]
    args = [q_in, k_in, v_in, wq, bq, wk, bk, wv, bv]

    if mask is not None:
        mask3 = mask.reshape(b, 1, lk).astype(jnp.float32)
        in_specs.append(pl.BlockSpec((bt, 1, kv_tile), lambda bi, qi, kvi: (bi, 0, kvi)))
        args.append(mask3)
        kernel = functools.partial(_kernel_masked, scale=scale, compute_dtype=cd)
    else:
        kernel = functools.partial(_kernel_nomask, scale=scale, compute_dtype=cd)

    scratch_shapes = [
        pltpu.VMEM((nkv, bt, kv_tile, d), cd),          # projected K cache
        pltpu.VMEM((nkv, bt, kv_tile, d), cd),          # projected V cache
        pltpu.VMEM((bt, q_block, d), cd),               # projected (pre-scaled) Q tile
        pltpu.VMEM((bt, q_block, 1), jnp.float32),      # running max
        pltpu.VMEM((bt, q_block, 1), jnp.float32),      # running denom
        pltpu.VMEM((bt, q_block, d), jnp.float32),      # unnormalized output acc
    ]

    # Shape-aware VMEM budget: double-buffered blocks + scratch + score working set.
    est = (2 * bt * q_block * d * cd.itemsize
           + 2 * 2 * bt * kv_tile * d * cd.itemsize
           + 2 * 3 * (d * d + d) * cd.itemsize
           + 2 * bt * q_block * d * jnp.dtype(out_dtype).itemsize
           + 2 * nkv * bt * kv_tile * d * cd.itemsize
           + bt * q_block * (2 * d + kv_tile + 2) * 4
           + (2 * bt * kv_tile * 4 if mask is not None else 0))
    vmem_limit = int(min(64 * 1024 * 1024, max(16 * 1024 * 1024, 2 * est)))

    flops = 4 * b * d * (lq * d + lk * d + lq * lk)
    transcendentals = b * lq * (lk + 2 * nkv)
    bytes_accessed = (cd.itemsize * (b * lq * d + 2 * b * lk * d + 3 * d * d)
                      + 12 * d
                      + jnp.dtype(out_dtype).itemsize * b * lq * d
                      + (4 * b * lk if mask is not None else 0))

    return pl.pallas_call(
        kernel,
        out_shape=jax.ShapeDtypeStruct((b, lq, d), out_dtype),
        grid=(nb, nq, nkv),
        in_specs=in_specs,
        out_specs=pl.BlockSpec((bt, q_block, d), lambda bi, qi, kvi: (bi, qi, 0)),
        scratch_shapes=scratch_shapes,
        compiler_params=pltpu.CompilerParams(
            # batch tiles may split across cores; q/kv axes carry scratch state.
            dimension_semantics=("parallel", "arbitrary", "arbitrary"),
            vmem_limit_bytes=vmem_limit),
        cost_estimate=pl.CostEstimate(flops=flops,
                                      transcendentals=transcendentals,
                                      bytes_accessed=bytes_accessed),
    )(*args)


# --------------------------- Reference & params -------------------------------

def cross_attention_reference(params, query, key, value, mask=None):
    """Pure-JAX reference mirroring the torch module (layer_past=None)."""
    d = query.shape[-1]
    q = query @ params["wq"] + params["bq"]
    k = key @ params["wk"] + params["bk"]
    v = value @ params["wv"] + params["bv"]
    scores = jnp.einsum("bqd,bkd->bqk", q, k) / math.sqrt(d)
    if mask is not None:
        m = mask.reshape(mask.shape[0], 1, mask.shape[-1])
        scores = jnp.where(m == 0, -jnp.inf, scores)
    p = jax.nn.softmax(scores, axis=-1)
    ctx = jnp.einsum("bqk,bkd->bqd", p, v)
    return ctx @ params["wv"] + params["bv"]            # linears[-1] == linears[2]


def init_params(rng, d_model):
    ks = jax.random.split(rng, 6)

    def lin(kw, kb):
        # (in, out) layout == torch weight^T, so kernels compute x @ W + b.
        w = jax.random.normal(kw, (d_model, d_model), jnp.float32) * 0.02
        b = jax.random.normal(kb, (1, d_model), jnp.float32) * 0.02
        return w, b

    wq, bq = lin(ks[0], ks[1])
    wk, bk = lin(ks[2], ks[3])
    wv, bv = lin(ks[4], ks[5])
    return {"wq": wq, "bq": bq, "wk": wk, "bk": bk, "wv": wv, "bv": bv}


# ----------------------------------- Main --------------------------------------

if __name__ == "__main__":
    D = 128                                    # lane-dense feature dim
    root = jax.random.PRNGKey(0)
    kp, k1, k2 = jax.random.split(root, 3)
    params = init_params(kp, D)

    fwd = jax.jit(cross_attention_forward, static_argnames=("compute_dtype",))

    # -------- Case 1: small decode-like shapes (single kv tile, batch-tiled M). ----
    B, LQ, LK = 2, 8, 16
    kq, kk, kvv = jax.random.split(k1, 3)
    query = jax.random.normal(kq, (B, LQ, D), jnp.float32)
    key_ = jax.random.normal(kk, (B, LK, D), jnp.float32)
    value = jax.random.normal(kvv, (B, LK, D), jnp.float32)
    mask = jnp.stack([
        jnp.ones((LK,), jnp.float32),
        jnp.concatenate([jnp.ones((12,), jnp.float32), jnp.zeros((4,), jnp.float32)]),
    ], axis=0)

    with jax.default_matmul_precision("highest"):
        ref = cross_attention_reference(params, query, key_, value, mask)
        ref_nm = cross_attention_reference(params, query, key_, value, None)

    out_f32 = fwd(params, query, key_, value, mask, compute_dtype=jnp.float32)
    jax.block_until_ready(out_f32)
    assert out_f32.shape == (B, LQ, D)
    assert jnp.allclose(out_f32, ref, atol=2e-3, rtol=2e-2), \
        float(jnp.max(jnp.abs(out_f32 - ref)))

    out_bf16 = fwd(params, query, key_, value, mask)           # default bf16 MXU path
    jax.block_until_ready(out_bf16)
    assert jnp.allclose(out_bf16, ref, atol=5e-2, rtol=5e-2), \
        float(jnp.max(jnp.abs(out_bf16 - ref)))

    out_nm = fwd(params, query, key_, value, None, compute_dtype=jnp.float32)
    jax.block_until_ready(out_nm)
    assert jnp.allclose(out_nm, ref_nm, atol=2e-3, rtol=2e-2)

    # -------- Case 2: tiled path (nq=2 q-tiles, nkv=2 kv-tiles, cached K/V proj). ----
    B2, LQ2, LK2 = 2, 256, 512
    kq2, kk2, kv2 = jax.random.split(k2, 3)
    query2 = jax.random.normal(kq2, (B2, LQ2, D), jnp.float32)
    key2 = jax.random.normal(kk2, (B2, LK2, D), jnp.float32)
    value2 = jax.random.normal(kv2, (B2, LK2, D), jnp.float32)
    lens = jnp.array([LK2, 300], jnp.int32)
    mask2 = (jnp.arange(LK2)[None, :] < lens[:, None]).astype(jnp.float32)

    with jax.default_matmul_precision("highest"):
        ref2 = cross_attention_reference(params, query2, key2, value2, mask2)

    out2_f32 = fwd(params, query2, key2, value2, mask2, compute_dtype=jnp.float32)
    jax.block_until_ready(out2_f32)
    assert jnp.allclose(out2_f32, ref2, atol=2e-3, rtol=2e-2), \
        float(jnp.max(jnp.abs(out2_f32 - ref2)))

    out2_bf16 = fwd(params, query2, key2, value2, mask2)
    jax.block_until_ready(out2_bf16)
    assert jnp.allclose(out2_bf16, ref2, atol=5e-2, rtol=5e-2), \
        float(jnp.max(jnp.abs(out2_bf16 - ref2)))

    print("KERNEL_OK")
</pallas_src>

<mosaic_0001>
module attributes {stable_mosaic.version = 11 : i64} {
  func.func @_kernel_masked(%arg0: i32, %arg1: i32, %arg2: i32, %arg3: memref<2x8x128xf32, #tpu.memory_space<vmem>>, %arg4: memref<2x16x128xf32, #tpu.memory_space<vmem>>, %arg5: memref<2x16x128xf32, #tpu.memory_space<vmem>>, %arg6: memref<128x128xf32, #tpu.memory_space<vmem>>, %arg7: memref<1x128xf32, #tpu.memory_space<vmem>>, %arg8: memref<128x128xf32, #tpu.memory_space<vmem>>, %arg9: memref<1x128xf32, #tpu.memory_space<vmem>>, %arg10: memref<128x128xf32, #tpu.memory_space<vmem>>, %arg11: memref<1x128xf32, #tpu.memory_space<vmem>>, %arg12: memref<2x1x16xf32, #tpu.memory_space<vmem>>, %arg13: memref<2x8x128xf32, #tpu.memory_space<vmem>>, %arg14: memref<1x2x16x128xf32, #tpu.memory_space<vmem>>, %arg15: memref<1x2x16x128xf32, #tpu.memory_space<vmem>>, %arg16: memref<2x8x128xf32, #tpu.memory_space<vmem>>, %arg17: memref<2x8x1xf32, #tpu.memory_space<vmem>>, %arg18: memref<2x8x1xf32, #tpu.memory_space<vmem>>, %arg19: memref<2x8x128xf32, #tpu.memory_space<vmem>>) attributes {dimension_semantics = [#tpu.dimension_semantics<parallel>, #tpu.dimension_semantics<arbitrary>, #tpu.dimension_semantics<arbitrary>], iteration_bounds = array<i64: 1, 1, 1>, scalar_prefetch = 0 : i64, scratch_operands = 6 : i64, tpu.core_type = #tpu.core_type<tc>, window_params = [{transform_indices = @transform_0, window_bounds = array<i64: 2, 8, 128>}, {transform_indices = @transform_1, window_bounds = array<i64: 2, 16, 128>}, {transform_indices = @transform_2, window_bounds = array<i64: 2, 16, 128>}, {pipeline_mode = #tpu.pipeline_mode<synchronous>, transform_indices = @transform_3, window_bounds = array<i64: 128, 128>}, {pipeline_mode = #tpu.pipeline_mode<synchronous>, transform_indices = @transform_4, window_bounds = array<i64: 1, 128>}, {pipeline_mode = #tpu.pipeline_mode<synchronous>, transform_indices = @transform_5, window_bounds = array<i64: 128, 128>}, {pipeline_mode = #tpu.pipeline_mode<synchronous>, transform_indices = @transform_6, window_bounds = array<i64: 1, 128>}, {pipeline_mode = #tpu.pipeline_mode<synchronous>, transform_indices = @transform_7, window_bounds = array<i64: 128, 128>}, {pipeline_mode = #tpu.pipeline_mode<synchronous>, transform_indices = @transform_8, window_bounds = array<i64: 1, 128>}, {transform_indices = @transform_9, window_bounds = array<i64: 2, 1, 16>}, {transform_indices = @transform_10, window_bounds = array<i64: 2, 8, 128>}]} {
    %c0_i32 = arith.constant 0 : i32
    %0 = arith.cmpi eq, %arg1, %c0_i32 : i32
    %1 = arith.extui %0 : i1 to i32
    %c0_i32_0 = arith.constant 0 : i32
    %2 = arith.cmpi ne, %1, %c0_i32_0 : i32
    scf.if %2 {
      %c0_39 = arith.constant 0 : index
      %c0_40 = arith.constant 0 : index
      %c0_41 = arith.constant 0 : index
      %46 = vector.load %arg4[%c0_39, %c0_40, %c0_41] : memref<2x16x128xf32, #tpu.memory_space<vmem>>, vector<2x16x128xf32>
      %47 = vector.shape_cast %46 : vector<2x16x128xf32> to vector<32x128xf32>
      %c0_42 = arith.constant 0 : index
      %c0_43 = arith.constant 0 : index
      %c0_44 = arith.constant 0 : index
      %48 = vector.load %arg5[%c0_42, %c0_43, %c0_44] : memref<2x16x128xf32, #tpu.memory_space<vmem>>, vector<2x16x128xf32>
      %49 = vector.shape_cast %48 : vector<2x16x128xf32> to vector<32x128xf32>
      %c0_45 = arith.constant 0 : index
      %c0_46 = arith.constant 0 : index
      %50 = vector.load %arg8[%c0_45, %c0_46] : memref<128x128xf32, #tpu.memory_space<vmem>>, vector<128x128xf32>
      %cst_47 = arith.constant dense<0.000000e+00> : vector<32x128xf32>
      %51 = tpu.matmul %47, %50, %cst_47 {dimension_numbers = #tpu.dot_dimension_numbers<[1], [0], [0], [1], [0, 0, 1, 1], [], []>} : vector<32x128xf32>, vector<128x128xf32>, vector<32x128xf32> -> vector<32x128xf32>
      %c0_48 = arith.constant 0 : index
      %c0_49 = arith.constant 0 : index
      %52 = vector.load %arg9[%c0_48, %c0_49] : memref<1x128xf32, #tpu.memory_space<vmem>>, vector<1x128xf32>
      %53 = vector.broadcast %52 : vector<1x128xf32> to vector<32x128xf32>
      %54 = arith.addf %51, %53 : vector<32x128xf32>
      %c0_50 = arith.constant 0 : index
      %c0_51 = arith.constant 0 : index
      %55 = vector.load %arg10[%c0_50, %c0_51] : memref<128x128xf32, #tpu.memory_space<vmem>>, vector<128x128xf32>
      %cst_52 = arith.constant dense<0.000000e+00> : vector<32x128xf32>
      %56 = tpu.matmul %49, %55, %cst_52 {dimension_numbers = #tpu.dot_dimension_numbers<[1], [0], [0], [1], [0, 0, 1, 1], [], []>} : vector<32x128xf32>, vector<128x128xf32>, vector<32x128xf32> -> vector<32x128xf32>
      %c0_53 = arith.constant 0 : index
      %c0_54 = arith.constant 0 : index
      %57 = vector.load %arg11[%c0_53, %c0_54] : memref<1x128xf32, #tpu.memory_space<vmem>>, vector<1x128xf32>
      %58 = vector.broadcast %57 : vector<1x128xf32> to vector<32x128xf32>
      %59 = arith.addf %56, %58 : vector<32x128xf32>
      %60 = vector.shape_cast %54 : vector<32x128xf32> to vector<2x16x128xf32>
      %61 = arith.index_cast %arg2 : i32 to index
      %c0_55 = arith.constant 0 : index
      %c0_56 = arith.constant 0 : index
      %c0_57 = arith.constant 0 : index
      %62 = vector.load %arg14[%61, %c0_55, %c0_56, %c0_57] : memref<1x2x16x128xf32, #tpu.memory_space<vmem>>, vector<1x2x16x128xf32>
      %63 = vector.shape_cast %62 : vector<1x2x16x128xf32> to vector<2x16x128xf32>
      %64 = vector.shape_cast %60 : vector<2x16x128xf32> to vector<1x2x16x128xf32>
      tpu.vector_store %arg14[%61, %c0_55, %c0_56, %c0_57], %64 {strides = array<i32>} : memref<1x2x16x128xf32, #tpu.memory_space<vmem>>, vector<1x2x16x128xf32>,
      %65 = vector.shape_cast %59 : vector<32x128xf32> to vector<2x16x128xf32>
      %66 = arith.index_cast %arg2 : i32 to index
      %c0_58 = arith.constant 0 : index
      %c0_59 = arith.constant 0 : index
      %c0_60 = arith.constant 0 : index
      %67 = vector.load %arg15[%66, %c0_58, %c0_59, %c0_60] : memref<1x2x16x128xf32, #tpu.memory_space<vmem>>, vector<1x2x16x128xf32>
      %68 = vector.shape_cast %67 : vector<1x2x16x128xf32> to vector<2x16x128xf32>
      %69 = vector.shape_cast %65 : vector<2x16x128xf32> to vector<1x2x16x128xf32>
      tpu.vector_store %arg15[%66, %c0_58, %c0_59, %c0_60], %69 {strides = array<i32>} : memref<1x2x16x128xf32, #tpu.memory_space<vmem>>, vector<1x2x16x128xf32>,
    } else {
    }
    %c0_i32_1 = arith.constant 0 : i32
    %3 = arith.cmpi eq, %arg2, %c0_i32_1 : i32
    %4 = arith.extui %3 : i1 to i32
    %c0_i32_2 = arith.constant 0 : i32
    %5 = arith.cmpi ne, %4, %c0_i32_2 : i32
    scf.if %5 {
      %c0_39 = arith.constant 0 : index
      %c0_40 = arith.constant 0 : index
      %c0_41 = arith.constant 0 : index
      %46 = vector.load %arg3[%c0_39, %c0_40, %c0_41] : memref<2x8x128xf32, #tpu.memory_space<vmem>>, vector<2x8x128xf32>
      %47 = vector.shape_cast %46 : vector<2x8x128xf32> to vector<16x128xf32>
      %c0_42 = arith.constant 0 : index
      %c0_43 = arith.constant 0 : index
      %48 = vector.load %arg6[%c0_42, %c0_43] : memref<128x128xf32, #tpu.memory_space<vmem>>, vector<128x128xf32>
      %cst_44 = arith.constant dense<0.000000e+00> : vector<16x128xf32>
      %49 = tpu.matmul %47, %48, %cst_44 {dimension_numbers = #tpu.dot_dimension_numbers<[1], [0], [0], [1], [0, 0, 1, 1], [], []>} : vector<16x128xf32>, vector<128x128xf32>, vector<16x128xf32> -> vector<16x128xf32>
      %c0_45 = arith.constant 0 : index
      %c0_46 = arith.constant 0 : index
      %50 = vector.load %arg7[%c0_45, %c0_46] : memref<1x128xf32, #tpu.memory_space<vmem>>, vector<1x128xf32>
      %51 = vector.broadcast %50 : vector<1x128xf32> to vector<16x128xf32>
      %52 = arith.addf %49, %51 : vector<16x128xf32>
      %cst_47 = arith.constant 0.0883883461 : f32
      %53 = vector.broadcast %cst_47 : f32 to vector<16x128xf32>
      %54 = arith.mulf %52, %53 : vector<16x128xf32>
      %55 = vector.shape_cast %54 : vector<16x128xf32> to vector<2x8x128xf32>
      %c0_48 = arith.constant 0 : index
      %c0_49 = arith.constant 0 : index
      %c0_50 = arith.constant 0 : index
      %56 = vector.load %arg16[%c0_48, %c0_49, %c0_50] : memref<2x8x128xf32, #tpu.memory_space<vmem>>, vector<2x8x128xf32>
      tpu.vector_store %arg16[%c0_48, %c0_49, %c0_50], %55 {strides = array<i32>} : memref<2x8x128xf32, #tpu.memory_space<vmem>>, vector<2x8x128xf32>,
      %cst_51 = arith.constant -3.40282347E+38 : f32
      %57 = vector.broadcast %cst_51 : f32 to vector<2x8x1xf32>
      %c0_52 = arith.constant 0 : index
      %c0_53 = arith.constant 0 : index
      %c0_54 = arith.constant 0 : index
      %58 = vector.load %arg17[%c0_52, %c0_53, %c0_54] : memref<2x8x1xf32, #tpu.memory_space<vmem>>, vector<2x8x1xf32>
      tpu.vector_store %arg17[%c0_52, %c0_53, %c0_54], %57 {strides = array<i32>} : memref<2x8x1xf32, #tpu.memory_space<vmem>>, vector<2x8x1xf32>,
      %cst_55 = arith.constant 0.000000e+00 : f32
      %59 = vector.broadcast %cst_55 : f32 to vector<2x8x1xf32>
      %c0_56 = arith.constant 0 : index
      %c0_57 = arith.constant 0 : index
      %c0_58 = arith.constant 0 : index
      %60 = vector.load %arg18[%c0_56, %c0_57, %c0_58] : memref<2x8x1xf32, #tpu.memory_space<vmem>>, vector<2x8x1xf32>
      tpu.vector_store %arg18[%c0_56, %c0_57, %c0_58], %59 {strides = array<i32>} : memref<2x8x1xf32, #tpu.memory_space<vmem>>, vector<2x8x1xf32>,
      %cst_59 = arith.constant 0.000000e+00 : f32
      %61 = vector.broadcast %cst_59 : f32 to vector<2x8x128xf32>
      %c0_60 = arith.constant 0 : index
      %c0_61 = arith.constant 0 : index
      %c0_62 = arith.constant 0 : index
      %62 = vector.load %arg19[%c0_60, %c0_61, %c0_62] : memref<2x8x128xf32, #tpu.memory_space<vmem>>, vector<2x8x128xf32>
      tpu.vector_store %arg19[%c0_60, %c0_61, %c0_62], %61 {strides = array<i32>} : memref<2x8x128xf32, #tpu.memory_space<vmem>>, vector<2x8x128xf32>,
    } else {
    }
    %6 = arith.index_cast %arg2 : i32 to index
    %c0 = arith.constant 0 : index
    %c0_3 = arith.constant 0 : index
    %c0_4 = arith.constant 0 : index
    %7 = vector.load %arg14[%6, %c0, %c0_3, %c0_4] : memref<1x2x16x128xf32, #tpu.memory_space<vmem>>, vector<1x2x16x128xf32>
    %8 = vector.shape_cast %7 : vector<1x2x16x128xf32> to vector<2x16x128xf32>
    %9 = arith.index_cast %arg2 : i32 to index
    %c0_5 = arith.constant 0 : index
    %c0_6 = arith.constant 0 : index
    %c0_7 = arith.constant 0 : index
    %10 = vector.load %arg15[%9, %c0_5, %c0_6, %c0_7] : memref<1x2x16x128xf32, #tpu.memory_space<vmem>>, vector<1x2x16x128xf32>
    %11 = vector.shape_cast %10 : vector<1x2x16x128xf32> to vector<2x16x128xf32>
    %c0_8 = arith.constant 0 : index
    %c0_9 = arith.constant 0 : index
    %c0_10 = arith.constant 0 : index
    %12 = vector.load %arg16[%c0_8, %c0_9, %c0_10] : memref<2x8x128xf32, #tpu.memory_space<vmem>>, vector<2x8x128xf32>
    %cst = arith.constant dense<0.000000e+00> : vector<2x8x16xf32>
    %13 = tpu.matmul %12, %8, %cst {dimension_numbers = #tpu.dot_dimension_numbers<[2], [2], [1], [1], [0, 0, 0, 1, 1, 1], [0], [0]>} : vector<2x8x128xf32>, vector<2x16x128xf32>, vector<2x8x16xf32> -> vector<2x8x16xf32>
    %c0_11 = arith.constant 0 : index
    %c0_12 = arith.constant 0 : index
    %c0_13 = arith.constant 0 : index
    %14 = vector.load %arg12[%c0_11, %c0_12, %c0_13] : memref<2x1x16xf32, #tpu.memory_space<vmem>>, vector<2x1x16xf32>
    %cst_14 = arith.constant 0.000000e+00 : f32
    %15 = vector.broadcast %cst_14 : f32 to vector<2x1x16xf32>
    %16 = arith.cmpf oeq, %14, %15 : vector<2x1x16xf32>
    %cst_15 = arith.constant -1.000000e+30 : f32
    %17 = vector.shape_cast %16 : vector<2x1x16xi1> to vector<2x1x16xi1>
    %18 = vector.broadcast %17 : vector<2x1x16xi1> to vector<2x8x16xi1>
    %19 = vector.broadcast %cst_15 : f32 to vector<2x8x16xf32>
    %20 = arith.select %18, %19, %13 : vector<2x8x16xi1>, vector<2x8x16xf32>
    %c0_16 = arith.constant 0 : index
    %c0_17 = arith.constant 0 : index
    %c0_18 = arith.constant 0 : index
    %21 = vector.load %arg17[%c0_16, %c0_17, %c0_18] : memref<2x8x1xf32, #tpu.memory_space<vmem>>, vector<2x8x1xf32>
    %cst_19 = arith.constant dense<0xFF800000> : vector<2x8xf32>
    %22 = vector.multi_reduction <maximumf>, %20, %cst_19 [2] : vector<2x8x16xf32> to vector<2x8xf32>
    %23 = vector.shape_cast %22 : vector<2x8xf32> to vector<2x8x1xf32>
    %24 = arith.maximumf %21, %23 : vector<2x8x1xf32>
    %25 = arith.subf %21, %24 : vector<2x8x1xf32>
    %26 = math.exp %25 : vector<2x8x1xf32>
    %27 = vector.broadcast %24 : vector<2x8x1xf32> to vector<2x8x16xf32>
    %28 = arith.subf %20, %27 : vector<2x8x16xf32>
    %29 = math.exp %28 : vector<2x8x16xf32>
    %c0_20 = arith.constant 0 : index
    %c0_21 = arith.constant 0 : index
    %c0_22 = arith.constant 0 : index
    %30 = vector.load %arg18[%c0_20, %c0_21, %c0_22] : memref<2x8x1xf32, #tpu.memory_space<vmem>>, vector<2x8x1xf32>
    %31 = arith.mulf %26, %30 : vector<2x8x1xf32>
    %cst_23 = arith.constant dense<0.000000e+00> : vector<2x8xf32>
    %32 = vector.multi_reduction <add>, %29, %cst_23 [2] : vector<2x8x16xf32> to vector<2x8xf32>
    %33 = vector.shape_cast %32 : vector<2x8xf32> to vector<2x8x1xf32>
    %34 = arith.addf %31, %33 : vector<2x8x1xf32>
    %c0_24 = arith.constant 0 : index
    %c0_25 = arith.constant 0 : index
    %c0_26 = arith.constant 0 : index
    %35 = vector.load %arg18[%c0_24, %c0_25, %c0_26] : memref<2x8x1xf32, #tpu.memory_space<vmem>>, vector<2x8x1xf32>
    tpu.vector_store %arg18[%c0_24, %c0_25, %c0_26], %34 {strides = array<i32>} : memref<2x8x1xf32, #tpu.memory_space<vmem>>, vector<2x8x1xf32>,
    %c0_27 = arith.constant 0 : index
    %c0_28 = arith.constant 0 : index
    %c0_29 = arith.constant 0 : index
    %36 = vector.load %arg19[%c0_27, %c0_28, %c0_29] : memref<2x8x128xf32, #tpu.memory_space<vmem>>, vector<2x8x128xf32>
    %37 = vector.broadcast %26 : vector<2x8x1xf32> to vector<2x8x128xf32>
    %38 = arith.mulf %37, %36 : vector<2x8x128xf32>
    %cst_30 = arith.constant dense<0.000000e+00> : vector<2x8x128xf32>
    %39 = tpu.matmul %29, %11, %cst_30 {dimension_numbers = #tpu.dot_dimension_numbers<[2], [1], [1], [2], [0, 0, 0, 1, 1, 2], [0], [0]>} : vector<2x8x16xf32>, vector<2x16x128xf32>, vector<2x8x128xf32> -> vector<2x8x128xf32>
    %40 = arith.addf %38, %39 : vector<2x8x128xf32>
    %c0_31 = arith.constant 0 : index
    %c0_32 = arith.constant 0 : index
    %c0_33 = arith.constant 0 : index
    %41 = vector.load %arg19[%c0_31, %c0_32, %c0_33] : memref<2x8x128xf32, #tpu.memory_space<vmem>>, vector<2x8x128xf32>
    tpu.vector_store %arg19[%c0_31, %c0_32, %c0_33], %40 {strides = array<i32>} : memref<2x8x128xf32, #tpu.memory_space<vmem>>, vector<2x8x128xf32>,
    %c0_34 = arith.constant 0 : index
    %c0_35 = arith.constant 0 : index
    %c0_36 = arith.constant 0 : index
    %42 = vector.load %arg17[%c0_34, %c0_35, %c0_36] : memref<2x8x1xf32, #tpu.memory_space<vmem>>, vector<2x8x1xf32>
    tpu.vector_store %arg17[%c0_34, %c0_35, %c0_36], %24 {strides = array<i32>} : memref<2x8x1xf32, #tpu.memory_space<vmem>>, vector<2x8x1xf32>,
    %c0_i32_37 = arith.constant 0 : i32
    %43 = arith.cmpi eq, %arg2, %c0_i32_37 : i32
    %44 = arith.extui %43 : i1 to i32
    %c0_i32_38 = arith.constant 0 : i32
    %45 = arith.cmpi ne, %44, %c0_i32_38 : i32
    scf.if %45 {
      %c0_39 = arith.constant 0 : index
      %c0_40 = arith.constant 0 : index
      %c0_41 = arith.constant 0 : index
      %46 = vector.load %arg19[%c0_39, %c0_40, %c0_41] : memref<2x8x128xf32, #tpu.memory_space<vmem>>, vector<2x8x128xf32>
      %c0_42 = arith.constant 0 : index
      %c0_43 = arith.constant 0 : index
      %c0_44 = arith.constant 0 : index
      %47 = vector.load %arg18[%c0_42, %c0_43, %c0_44] : memref<2x8x1xf32, #tpu.memory_space<vmem>>, vector<2x8x1xf32>
      %48 = tpu.reciprocal %47 {approx = true} : vector<2x8x1xf32> -> vector<2x8x1xf32>
      %49 = vector.broadcast %48 : vector<2x8x1xf32> to vector<2x8x128xf32>
      %50 = arith.mulf %46, %49 : vector<2x8x128xf32>
      %51 = vector.shape_cast %50 : vector<2x8x128xf32> to vector<16x128xf32>
      %c0_45 = arith.constant 0 : index
      %c0_46 = arith.constant 0 : index
      %52 = vector.load %arg10[%c0_45, %c0_46] : memref<128x128xf32, #tpu.memory_space<vmem>>, vector<128x128xf32>
      %cst_47 = arith.constant dense<0.000000e+00> : vector<16x128xf32>
      %53 = tpu.matmul %51, %52, %cst_47 {dimension_numbers = #tpu.dot_dimension_numbers<[1], [0], [0], [1], [0, 0, 1, 1], [], []>} : vector<16x128xf32>, vector<128x128xf32>, vector<16x128xf32> -> vector<16x128xf32>
      %c0_48 = arith.constant 0 : index
      %c0_49 = arith.constant 0 : index
      %54 = vector.load %arg11[%c0_48, %c0_49] : memref<1x128xf32, #tpu.memory_space<vmem>>, vector<1x128xf32>
      %55 = vector.broadcast %54 : vector<1x128xf32> to vector<16x128xf32>
      %56 = arith.addf %53, %55 : vector<16x128xf32>
      %57 = vector.shape_cast %56 : vector<16x128xf32> to vector<2x8x128xf32>
      %c0_50 = arith.constant 0 : index
      %c0_51 = arith.constant 0 : index
      %c0_52 = arith.constant 0 : index
      %58 = vector.load %arg13[%c0_50, %c0_51, %c0_52] : memref<2x8x128xf32, #tpu.memory_space<vmem>>, vector<2x8x128xf32>
      tpu.vector_store %arg13[%c0_50, %c0_51, %c0_52], %57 {strides = array<i32>} : memref<2x8x128xf32, #tpu.memory_space<vmem>>, vector<2x8x128xf32>,
    } else {
    }
    return
  }
  func.func @transform_0(%arg0: i32, %arg1: i32, %arg2: i32) -> (i32, i32, i32) {
    %c0_i32 = arith.constant 0 : i32
    %c0_i32_0 = arith.constant 0 : i32
    return %arg0, %arg1, %c0_i32 : i32, i32, i32
  }
  func.func @transform_1(%arg0: i32, %arg1: i32, %arg2: i32) -> (i32, i32, i32) {
    %c0_i32 = arith.constant 0 : i32
    %c0_i32_0 = arith.constant 0 : i32
    return %arg0, %arg2, %c0_i32 : i32, i32, i32
  }
  func.func @transform_2(%arg0: i32, %arg1: i32, %arg2: i32) -> (i32, i32, i32) {
    %c0_i32 = arith.constant 0 : i32
    %c0_i32_0 = arith.constant 0 : i32
    return %arg0, %arg2, %c0_i32 : i32, i32, i32
  }
  func.func @transform_3(%arg0: i32, %arg1: i32, %arg2: i32) -> (i32, i32) {
    %c0_i32 = arith.constant 0 : i32
    %c0_i32_0 = arith.constant 0 : i32
    %c0_i32_1 = arith.constant 0 : i32
    return %c0_i32, %c0_i32_0 : i32, i32
  }
  func.func @transform_4(%arg0: i32, %arg1: i32, %arg2: i32) -> (i32, i32) {
    %c0_i32 = arith.constant 0 : i32
    %c0_i32_0 = arith.constant 0 : i32
    %c0_i32_1 = arith.constant 0 : i32
    return %c0_i32, %c0_i32_0 : i32, i32
  }
  func.func @transform_5(%arg0: i32, %arg1: i32, %arg2: i32) -> (i32, i32) {
    %c0_i32 = arith.constant 0 : i32
    %c0_i32_0 = arith.constant 0 : i32
    %c0_i32_1 = arith.constant 0 : i32
    return %c0_i32, %c0_i32_0 : i32, i32
  }
  func.func @transform_6(%arg0: i32, %arg1: i32, %arg2: i32) -> (i32, i32) {
    %c0_i32 = arith.constant 0 : i32
    %c0_i32_0 = arith.constant 0 : i32
    %c0_i32_1 = arith.constant 0 : i32
    return %c0_i32, %c0_i32_0 : i32, i32
  }
  func.func @transform_7(%arg0: i32, %arg1: i32, %arg2: i32) -> (i32, i32) {
    %c0_i32 = arith.constant 0 : i32
    %c0_i32_0 = arith.constant 0 : i32
    %c0_i32_1 = arith.constant 0 : i32
    return %c0_i32, %c0_i32_0 : i32, i32
  }
  func.func @transform_8(%arg0: i32, %arg1: i32, %arg2: i32) -> (i32, i32) {
    %c0_i32 = arith.constant 0 : i32
    %c0_i32_0 = arith.constant 0 : i32
    %c0_i32_1 = arith.constant 0 : i32
    return %c0_i32, %c0_i32_0 : i32, i32
  }
  func.func @transform_9(%arg0: i32, %arg1: i32, %arg2: i32) -> (i32, i32, i32) {
    %c0_i32 = arith.constant 0 : i32
    %c0_i32_0 = arith.constant 0 : i32
    return %arg0, %c0_i32, %arg2 : i32, i32, i32
  }
  func.func @transform_10(%arg0: i32, %arg1: i32, %arg2: i32) -> (i32, i32, i32) {
    %c0_i32 = arith.constant 0 : i32
    %c0_i32_0 = arith.constant 0 : i32
    return %arg0, %arg1, %c0_i32 : i32, i32, i32
  }
}

</mosaic_0001>

<llo_original>
// kernel: cross_attention_forward.1
$region0: #{cross_attention_forward.1}
  #allocation0 [shape = 'u32[]', space=smem, size = 0x4, offset = 0x4, fixed_abs, tag = 'smem constant byte address 0x4 - core index']
  #allocation1 [shape = 'u32[144,128]{1,0:T(1,128)}', space=vmem, size = 0x12000, scoped, tag = 'internal scratch']
  #allocation2 [shape = 'f32[1,2,16,128]{3,2,1,0:T(8,128)}', space=vmem, size = 0x4000, scoped, tag = 'scratch operand']
  #allocation3 [shape = 'f32[1,2,16,128]{3,2,1,0:T(8,128)}', space=vmem, size = 0x4000, scoped, tag = 'scratch operand']
  #allocation4 [shape = 'f32[2,8,128]{2,1,0:T(8,128)}', space=vmem, size = 0x2000, scoped, tag = 'scratch operand']
  #allocation5 [shape = 'f32[2,8,1]{2,1,0:T(8,128)}', space=vmem, size = 0x2000, scoped, tag = 'scratch operand']
  #allocation6 [shape = 'f32[2,8,1]{2,1,0:T(8,128)}', space=vmem, size = 0x2000, scoped, tag = 'scratch operand']
  #allocation7 [shape = 'f32[2,8,128]{2,1,0:T(8,128)}', space=vmem, size = 0x2000, scoped, tag = 'scratch operand']
  %s0 = inlined_call_operand.hbm [shape: f32[2,8,128], index: 0, kind: input, shape index: {}]
  %s1 = inlined_call_operand.hbm [shape: f32[2,16,128], index: 1, kind: input, shape index: {}]
  %s2 = inlined_call_operand.vmem [shape: f32[2,16,128], index: 2, kind: input, shape index: {}]
  %s3 = inlined_call_operand.hbm [shape: f32[128,128], index: 3, kind: input, shape index: {}]
  %s4 = inlined_call_operand.hbm [shape: f32[1,128], index: 4, kind: input, shape index: {}]
  %s5 = inlined_call_operand.hbm [shape: f32[128,128], index: 5, kind: input, shape index: {}]
  %s6 = inlined_call_operand.hbm [shape: f32[1,128], index: 6, kind: input, shape index: {}]
  %s7 = inlined_call_operand.hbm [shape: f32[128,128], index: 7, kind: input, shape index: {}]
  %s8 = inlined_call_operand.hbm [shape: f32[1,128], index: 8, kind: input, shape index: {}]
  %s9 = inlined_call_operand.vmem [shape: f32[2,1,16], index: 9, kind: input, shape index: {}]
  %s10 = inlined_call_operand.hbm [shape: f32[2,8,128], index: 10, kind: output, shape index: {}]
  %s11 = sld [smem:[#allocation0]]
  $region94: #{cross_attention_forward.1} parent=0
    _
  %s13 = ssub.s32 1, %s11
  %s14 = scalar_select 0, %s13, %s11
  $region1: #{cross_attention_forward.1} parent=0
    #allocation8 [shape = 'u8[8192]{0}', space=vmem, size = 0x2000, scoped, tag = 'input window, operand 0, single buffered']
    #allocation9 [shape = 's32[1]{0}', space=sflag, size = 0x4, scoped, tag = 'scoped memory for cross_attention_forward.1']
    #allocation10 [shape = 's32[1]{0}', space=sflag, size = 0x4, scoped, tag = 'scoped memory for cross_attention_forward.1']
    #allocation11 [shape = 'u8[16384]{0}', space=vmem, size = 0x4000, scoped, tag = 'input window, operand 1, single buffered']
    #allocation12 [shape = 's32[1]{0}', space=sflag, size = 0x4, scoped, tag = 'scoped memory for cross_attention_forward.1']
    #allocation13 [shape = 'u8[65536]{0}', space=vmem, size = 0x10000, scoped, tag = 'input window, operand 3, single buffered']
    #allocation14 [shape = 'u8[512]{0}', space=vmem, size = 0x400, scoped, tag = 'input window, operand 4, single buffered']
    #allocation15 [shape = 's32[1]{0}', space=sflag, size = 0x4, scoped, tag = 'scoped memory for cross_attention_forward.1']
    #allocation16 [shape = 'u8[65536]{0}', space=vmem, size = 0x10000, scoped, tag = 'input window, operand 5, single buffered']
    #allocation17 [shape = 'u8[512]{0}', space=vmem, size = 0x400, scoped, tag = 'input window, operand 6, single buffered']
    #allocation18 [shape = 's32[1]{0}', space=sflag, size = 0x4, scoped, tag = 'scoped memory for cross_attention_forward.1']
    #allocation19 [shape = 'u8[65536]{0}', space=vmem, size = 0x10000, scoped, tag = 'input window, operand 7, single buffered']
    #allocation20 [shape = 'u8[512]{0}', space=vmem, size = 0x400, scoped, tag = 'input window, operand 8, single buffered']
    #allocation21 [shape = 's32[1]{0}', space=sflag, size = 0x4, scoped, tag = 'scoped memory for cross_attention_forward.1']
    #allocation22 [shape = 'u8[8192]{0}', space=vmem, size = 0x2000, scoped, tag = 'output window, operand 0, single buffered']
    %15 = vsyncpa [#allocation9], 0
    %16 = vsyncpa [#allocation12], 0
    %17 = vsyncpa [#allocation15], 0
    %18 = vsyncpa [#allocation18], 0
    %19 = vsyncpa [#allocation21], 0
    %20 = vsyncpa [#allocation10], 0
    // Predicated region
    $region2: #{cross_attention_forward.1} parent=1 // pred_check
      _
    $region3: #{cross_attention_forward.1} parent=1 // pred_check_branch
      %22 = sbr.rel (0) target = $region5
    $region4: #{cross_attention_forward.1} parent=1 // pred_region
      %s24 = ssub.s32 256, 256
      %25 = vsyncadd [#allocation9], %s24
      %s26 = sshll.u32 [#allocation8], 4
      %s27 = int_to_ptr.vmem [resolvable:$true] %s26
      %32 = dma.hbm_to_vmem [thread:$0]  %s0, 256, %s27, [#allocation9], 128, 128, 8
    $region5: #{cross_attention_forward.1} parent=1 // pred_fallthru
      _
    // Predicated region
    $region6: #{cross_attention_forward.1} parent=1 // pred_check
      _
    $region7: #{cross_attention_forward.1} parent=1 // pred_check_branch
      %34 = sbr.rel (0) target = $region9
    $region8: #{cross_attention_forward.1} parent=1 // pred_region
      %s36 = ssub.s32 512, 512
      %37 = vsyncadd [#allocation12], %s36
      %s38 = sshll.u32 [#allocation11], 4
      %s39 = int_to_ptr.vmem [resolvable:$true] %s38
      %44 = dma.hbm_to_vmem [thread:$0]  %s1, 512, %s39, [#allocation12], 128, 128, 8
    $region9: #{cross_attention_forward.1} parent=1 // pred_fallthru
      _
    // Predicated region
    $region10: #{cross_attention_forward.1} parent=1 // pred_check
      _
    $region11: #{cross_attention_forward.1} parent=1 // pred_check_branch
      %46 = sbr.rel (0) target = $region13
    $region12: #{cross_attention_forward.1} parent=1 // pred_region
      _
    $region13: #{cross_attention_forward.1} parent=1 // pred_fallthru
      _
    // Predicated region
    $region14: #{cross_attention_forward.1} parent=1 // pred_check
      _
    $region15: #{cross_attention_forward.1} parent=1 // pred_check_branch
      %48 = sbr.rel (0) target = $region17
    $region16: #{cross_attention_forward.1} parent=1 // pred_region
      %s50 = ssub.s32 2048, 2048
      %51 = vsyncadd [#allocation12], %s50
      %s52 = sshll.u32 [#allocation13], 4
      %s53 = int_to_ptr.vmem [resolvable:$true] %s52
      %58 = dma.hbm_to_vmem [thread:$0]  %s3, 2048, %s53, [#allocation12], 128, 128, 8
    $region17: #{cross_attention_forward.1} parent=1 // pred_fallthru
      _
    // Predicated region
    $region18: #{cross_attention_forward.1} parent=1 // pred_check
      _
    $region19: #{cross_attention_forward.1} parent=1 // pred_check_branch
      %60 = sbr.rel (0) target = $region21
    $region20: #{cross_attention_forward.1} parent=1 // pred_region
      %s62 = ssub.s32 16, 16
      %63 = vsyncadd [#allocation15], %s62
      %s65 = sshll.u32 [#allocation14], 4
      %s66 = int_to_ptr.vmem [resolvable:$true] %s65
      %68 = dma.hbm_to_vmem [thread:$0]  %s4, 16, %s66, [#allocation15]
    $region21: #{cross_attention_forward.1} parent=1 // pred_fallthru
      _
    // Predicated region
    $region22: #{cross_attention_forward.1} parent=1 // pred_check
      _
    $region23: #{cross_attention_forward.1} parent=1 // pred_check_branch
      %70 = sbr.rel (0) target = $region25
    $region24: #{cross_attention_forward.1} parent=1 // pred_region
      %s72 = ssub.s32 2048, 2048
      %73 = vsyncadd [#allocation15], %s72
      %s74 = sshll.u32 [#allocation16], 4
      %s75 = int_to_ptr.vmem [resolvable:$true] %s74
      %80 = dma.hbm_to_vmem [thread:$0]  %s5, 2048, %s75, [#allocation15], 128, 128, 8
    $region25: #{cross_attention_forward.1} parent=1 // pred_fallthru
      _
    // Predicated region
    $region26: #{cross_attention_forward.1} parent=1 // pred_check
      _
    $region27: #{cross_attention_forward.1} parent=1 // pred_check_branch
      %82 = sbr.rel (0) target = $region29
    $region28: #{cross_attention_forward.1} parent=1 // pred_region
      %s84 = ssub.s32 16, 16
      %85 = vsyncadd [#allocation18], %s84
      %s87 = sshll.u32 [#allocation17], 4
      %s88 = int_to_ptr.vmem [resolvable:$true] %s87
      %90 = dma.hbm_to_vmem [thread:$0]  %s6, 16, %s88, [#allocation18]
    $region29: #{cross_attention_forward.1} parent=1 // pred_fallthru
      _
    // Predicated region
    $region30: #{cross_attention_forward.1} parent=1 // pred_check
      _
    $region31: #{cross_attention_forward.1} parent=1 // pred_check_branch
      %92 = sbr.rel (0) target = $region33
    $region32: #{cross_attention_forward.1} parent=1 // pred_region
      %s94 = ssub.s32 2048, 2048
      %95 = vsyncadd [#allocation18], %s94
      %s96 = sshll.u32 [#allocation19], 4
      %s97 = int_to_ptr.vmem [resolvable:$true] %s96
      %102 = dma.hbm_to_vmem [thread:$0]  %s7, 2048, %s97, [#allocation18], 128, 128, 8
    $region33: #{cross_attention_forward.1} parent=1 // pred_fallthru
      _
    // Predicated region
    $region34: #{cross_attention_forward.1} parent=1 // pred_check
      _
    $region35: #{cross_attention_forward.1} parent=1 // pred_check_branch
      %104 = sbr.rel (0) target = $region37
    $region36: #{cross_attention_forward.1} parent=1 // pred_region
      %s106 = ssub.s32 16, 16
      %107 = vsyncadd [#allocation21], %s106
      %s109 = sshll.u32 [#allocation20], 4
      %s110 = int_to_ptr.vmem [resolvable:$true] %s109
      %112 = dma.hbm_to_vmem [thread:$0]  %s8, 16, %s110, [#allocation21]
    $region37: #{cross_attention_forward.1} parent=1 // pred_fallthru
      _
    // Predicated region
    $region38: #{cross_attention_forward.1} parent=1 // pred_check
      _
    $region39: #{cross_attention_forward.1} parent=1 // pred_check_branch
      %114 = sbr.rel (0) target = $region41
    $region40: #{cross_attention_forward.1} parent=1 // pred_region
      _
    $region41: #{cross_attention_forward.1} parent=1 // pred_fallthru
      _
    // Predicated region
    $region42: #{cross_attention_forward.1} parent=1 // pred_check
      _
    $region43: #{cross_attention_forward.1} parent=1 // pred_check_branch
      %116 = sbr.rel (0) target = $region45
    $region44: #{cross_attention_forward.1} parent=1 // pred_region
      %117 = dma.done [#allocation9], 256
    $region45: #{cross_attention_forward.1} parent=1 // pred_fallthru
      _
    // Predicated region
    $region46: #{cross_attention_forward.1} parent=1 // pred_check
      _
    $region47: #{cross_attention_forward.1} parent=1 // pred_check_branch
      %119 = sbr.rel (0) target = $region49
    $region48: #{cross_attention_forward.1} parent=1 // pred_region
      %120 = dma.done [#allocation12], 512
    $region49: #{cross_attention_forward.1} parent=1 // pred_fallthru
      _
    // Predicated region
    $region50: #{cross_attention_forward.1} parent=1 // pred_check
      _
    $region51: #{cross_attention_forward.1} parent=1 // pred_check_branch
      %122 = sbr.rel (0) target = $region53
    $region52: #{cross_attention_forward.1} parent=1 // pred_region
      %123 = dma.done [#allocation12], 2048
    $region53: #{cross_attention_forward.1} parent=1 // pred_fallthru
      _
    // Predicated region
    $region54: #{cross_attention_forward.1} parent=1 // pred_check
      _
    $region55: #{cross_attention_forward.1} parent=1 // pred_check_branch
      %125 = sbr.rel (0) target = $region57
    $region56: #{cross_attention_forward.1} parent=1 // pred_region
      %126 = dma.done [#allocation15], 16
    $region57: #{cross_attention_forward.1} parent=1 // pred_fallthru
      _
    // Predicated region
    $region58: #{cross_attention_forward.1} parent=1 // pred_check
      _
    $region59: #{cross_attention_forward.1} parent=1 // pred_check_branch
      %128 = sbr.rel (0) target = $region61
    $region60: #{cross_attention_forward.1} parent=1 // pred_region
      %129 = dma.done [#allocation15], 2048
    $region61: #{cross_attention_forward.1} parent=1 // pred_fallthru
      _
    // Predicated region
    $region62: #{cross_attention_forward.1} parent=1 // pred_check
      _
    $region63: #{cross_attention_forward.1} parent=1 // pred_check_branch
      %131 = sbr.rel (0) target = $region65
    $region64: #{cross_attention_forward.1} parent=1 // pred_region
      %132 = dma.done [#allocation18], 16
    $region65: #{cross_attention_forward.1} parent=1 // pred_fallthru
      _
    // Predicated region
    $region66: #{cross_attention_forward.1} parent=1 // pred_check
      _
    $region67: #{cross_attention_forward.1} parent=1 // pred_check_branch
      %134 = sbr.rel (0) target = $region69
    $region68: #{cross_attention_forward.1} parent=1 // pred_region
      %135 = dma.done [#allocation18], 2048
    $region69: #{cross_attention_forward.1} parent=1 // pred_fallthru
      _
    // Predicated region
    $region70: #{cross_attention_forward.1} parent=1 // pred_check
      _
    $region71: #{cross_attention_forward.1} parent=1 // pred_check_branch
      %137 = sbr.rel (0) target = $region73
    $region72: #{cross_attention_forward.1} parent=1 // pred_region
      %138 = dma.done [#allocation21], 16
    $region73: #{cross_attention_forward.1} parent=1 // pred_fallthru
      _
    %p139 = scmp.eq.s32.totalorder 0, 0
    // Predicated region
    $region74: #{cross_attention_forward.1} parent=1 // pred_check
      %p140 = pneg %p139
    $region75: #{cross_attention_forward.1} parent=1 // pred_check_branch
      %142 = sbr.rel (%p140) target = $region77
    $region76: #{cross_attention_forward.1} parent=1 // pred_region
      %v143 = vld [vmem:[#allocation11] sm:$0xff]
      %v144 = vld [vmem:[#allocation11 + $0x8] sm:$0xff]
      %v145 = vld [vmem:[#allocation11 + $0x10] sm:$0xff]
      %v146 = vld [vmem:[#allocation11 + $0x18] sm:$0xff]
      %v147 = vld [vmem:[%s2] sm:$0xff]
      %v148 = vld [vmem:[%s2 + $0x8] sm:$0xff]
      %v149 = vld [vmem:[%s2 + $0x10] sm:$0xff]
      %v150 = vld [vmem:[%s2 + $0x18] sm:$0xff]
      %v151 = vld [vmem:[#allocation16] sm:$0xff]
      %v152 = vld [vmem:[#allocation16 + $0x8] sm:$0xff]
      %v153 = vld [vmem:[#allocation16 + $0x10] sm:$0xff]
      %v154 = vld [vmem:[#allocation16 + $0x18] sm:$0xff]
      %v155 = vld [vmem:[#allocation16 + $0x20] sm:$0xff]
      %v156 = vld [vmem:[#allocation16 + $0x28] sm:$0xff]
      %v157 = vld [vmem:[#allocation16 + $0x30] sm:$0xff]
      %v158 = vld [vmem:[#allocation16 + $0x38] sm:$0xff]
      %v159 = vld [vmem:[#allocation16 + $0x40] sm:$0xff]
      %v160 = vld [vmem:[#allocation16 + $0x48] sm:$0xff]
      %v161 = vld [vmem:[#allocation16 + $0x50] sm:$0xff]
      %v162 = vld [vmem:[#allocation16 + $0x58] sm:$0xff]
      %v163 = vld [vmem:[#allocation16 + $0x60] sm:$0xff]
      %v164 = vld [vmem:[#allocation16 + $0x68] sm:$0xff]
      %v165 = vld [vmem:[#allocation16 + $0x70] sm:$0xff]
      %v166 = vld [vmem:[#allocation16 + $0x78] sm:$0xff]
      %v167 = vld [vmem:[#allocation17] sm:$0x1]
      %v169 = vlaneseq
      %v170 = vshrl.u32 %v169, 7
      %v171 = vsub.s32 0, %v170
      %v172 = vrot.slane %v167, %v171
      %174 = vmatprep.subr.mxu0 0.0
      %175 = vmatpush1.msra.mxu0 %v151
      %176 = vmatprep.subr.mxu0 0.0
      %177 = vmatpush1.msra.mxu0 %v152
      %178 = vmatprep.subr.mxu0 0.0
      %179 = vmatpush1.msra.mxu0 %v153
      %180 = vmatprep.subr.mxu0 0.0
      %181 = vmatpush1.msra.mxu0 %v154
      %182 = vmatprep.subr.mxu0 0.0
      %183 = vmatpush1.msra.mxu0 %v155
      %184 = vmatprep.subr.mxu0 0.0
      %185 = vmatpush1.msra.mxu0 %v156
      %186 = vmatprep.subr.mxu0 0.0
      %187 = vmatpush1.msra.mxu0 %v157
      %188 = vmatprep.subr.mxu0 0.0
      %189 = vmatpush1.msra.mxu0 %v158
      %190 = vmatprep.subr.mxu0 0.0
      %191 = vmatpush1.msra.mxu0 %v159
      %192 = vmatprep.subr.mxu0 0.0
      %193 = vmatpush1.msra.mxu0 %v160
      %194 = vmatprep.subr.mxu0 0.0
      %195 = vmatpush1.msra.mxu0 %v161
      %196 = vmatprep.subr.mxu0 0.0
      %197 = vmatpush1.msra.mxu0 %v162
      %198 = vmatprep.subr.mxu0 0.0
      %199 = vmatpush1.msra.mxu0 %v163
      %200 = vmatprep.subr.mxu0 0.0
      %201 = vmatpush1.msra.mxu0 %v164
      %202 = vmatprep.subr.mxu0 0.0
      %203 = vmatpush1.msra.mxu0 %v165
      %204 = vmatprep.subr.mxu0 0.0
      %205 = vmatpush1.msra.mxu0 %v166
      %206 = vmatprep.subr.mxu0 0.0
      %207 = vmatpush1.msra.mxu0 0.0
      %208 = vmatprep.subr.mxu0 0.0
      %209 = vmatpush1.msra.mxu0 0.0
      %210 = vmatprep.subr.mxu0 0.0
      %211 = vmatpush1.msra.mxu0 0.0
      %212 = vmatprep.subr.mxu0 0.0
      %213 = vmatpush1.msra.mxu0 0.0
      %214 = vmatprep.subr.mxu0 0.0
      %215 = vmatpush1.msra.mxu0 0.0
      %216 = vmatprep.subr.mxu0 0.0
      %217 = vmatpush1.msra.mxu0 0.0
      %218 = vmatprep.subr.mxu0 0.0
      %219 = vmatpush1.msra.mxu0 0.0
      %220 = vmatprep.subr.mxu0 0.0
      %221 = vmatpush1.msra.mxu0 0.0
      %222 = vmatprep.subr.mxu0 0.0
      %223 = vmatpush1.msra.mxu0 0.0
      %224 = vmatprep.subr.mxu0 0.0
      %225 = vmatpush1.msra.mxu0 0.0
      %226 = vmatprep.subr.mxu0 0.0
      %227 = vmatpush1.msra.mxu0 0.0
      %228 = vmatprep.subr.mxu0 0.0
      %229 = vmatpush1.msra.mxu0 0.0
      %230 = vmatprep.subr.mxu0 0.0
      %231 = vmatpush1.msra.mxu0 0.0
      %232 = vmatprep.subr.mxu0 0.0
      %233 = vmatpush1.msra.mxu0 0.0
      %234 = vmatprep.subr.mxu0 0.0
      %235 = vmatpush1.msra.mxu0 0.0
      %236 = vmatprep.subr.mxu0 0.0
      %237 = vmatpush1.msra.mxu0 0.0
      %238 = vmatprep.mubr.f32.mxu0 0.0
      %239 = vmatmul.mubr.f32.gmra.mrb[0].mxu0 %v143
      %v240 = vpop.f32.mrb[0].mxu0
      %v241 = vadd.f32 %v172, %v240
      %v242 = vpop.f32.mrb[0].mxu0
      %243 = vmatprep.mubr.f32.mxu0 0.0
      %244 = vmatmul.mubr.f32.gmra.mrb[0].mxu0 %v144
      %v245 = vpop.f32.mrb[0].mxu0
      %v246 = vadd.f32 %v172, %v245
      %v247 = vpop.f32.mrb[0].mxu0
      %248 = vmatprep.mubr.f32.mxu0 0.0
      %249 = vmatmul.mubr.f32.gmra.mrb[0].mxu0 %v145
      %v250 = vpop.f32.mrb[0].mxu0
      %v251 = vadd.f32 %v172, %v250
      %v252 = vpop.f32.mrb[0].mxu0
      %253 = vmatprep.mubr.f32.mxu0 0.0
      %254 = vmatmul.mubr.f32.gmra.mrb[0].mxu0 %v146
      %v255 = vpop.f32.mrb[0].mxu0
      %v256 = vadd.f32 %v172, %v255
      %v257 = vpop.f32.mrb[0].mxu0
      %258 = vdwg.mxu0
      %v259 = vld [vmem:[#allocation19] sm:$0xff]
      %v260 = vld [vmem:[#allocation19 + $0x8] sm:$0xff]
      %v261 = vld [vmem:[#allocation19 + $0x10] sm:$0xff]
      %v262 = vld [vmem:[#allocation19 + $0x18] sm:$0xff]
      %v263 = vld [vmem:[#allocation19 + $0x20] sm:$0xff]
      %v264 = vld [vmem:[#allocation19 + $0x28] sm:$0xff]
      %v265 = vld [vmem:[#allocation19 + $0x30] sm:$0xff]
      %v266 = vld [vmem:[#allocation19 + $0x38] sm:$0xff]
      %v267 = vld [vmem:[#allocation19 + $0x40] sm:$0xff]
      %v268 = vld [vmem:[#allocation19 + $0x48] sm:$0xff]
      %v269 = vld [vmem:[#allocation19 + $0x50] sm:$0xff]
      %v270 = vld [vmem:[#allocation19 + $0x58] sm:$0xff]
      %v271 = vld [vmem:[#allocation19 + $0x60] sm:$0xff]
      %v272 = vld [vmem:[#allocation19 + $0x68] sm:$0xff]
      %v273 = vld [vmem:[#allocation19 + $0x70] sm:$0xff]
      %v274 = vld [vmem:[#allocation19 + $0x78] sm:$0xff]
      %v275 = vld [vmem:[#allocation20] sm:$0x1]
      %v277 = vlaneseq
      %v278 = vshrl.u32 %v277, 7
      %v279 = vsub.s32 0, %v278
      %v280 = vrot.slane %v275, %v279
      %282 = vmatprep.subr.mxu0 0.0
      %283 = vmatpush1.msra.mxu0 %v259
      %284 = vmatprep.subr.mxu0 0.0
      %285 = vmatpush1.msra.mxu0 %v260
      %286 = vmatprep.subr.mxu0 0.0
      %287 = vmatpush1.msra.mxu0 %v261
      %288 = vmatprep.subr.mxu0 0.0
      %289 = vmatpush1.msra.mxu0 %v262
      %290 = vmatprep.subr.mxu0 0.0
      %291 = vmatpush1.msra.mxu0 %v263
      %292 = vmatprep.subr.mxu0 0.0
      %293 = vmatpush1.msra.mxu0 %v264
      %294 = vmatprep.subr.mxu0 0.0
      %295 = vmatpush1.msra.mxu0 %v265
      %296 = vmatprep.subr.mxu0 0.0
      %297 = vmatpush1.msra.mxu0 %v266
      %298 = vmatprep.subr.mxu0 0.0
      %299 = vmatpush1.msra.mxu0 %v267
      %300 = vmatprep.subr.mxu0 0.0
      %301 = vmatpush1.msra.mxu0 %v268
      %302 = vmatprep.subr.mxu0 0.0
      %303 = vmatpush1.msra.mxu0 %v269
      %304 = vmatprep.subr.mxu0 0.0
      %305 = vmatpush1.msra.mxu0 %v270
      %306 = vmatprep.subr.mxu0 0.0
      %307 = vmatpush1.msra.mxu0 %v271
      %308 = vmatprep.subr.mxu0 0.0
      %309 = vmatpush1.msra.mxu0 %v272
      %310 = vmatprep.subr.mxu0 0.0
      %311 = vmatpush1.msra.mxu0 %v273
      %312 = vmatprep.subr.mxu0 0.0
      %313 = vmatpush1.msra.mxu0 %v274
      %314 = vmatprep.subr.mxu0 0.0
      %315 = vmatpush1.msra.mxu0 0.0
      %316 = vmatprep.subr.mxu0 0.0
      %317 = vmatpush1.msra.mxu0 0.0
      %318 = vmatprep.subr.mxu0 0.0
      %319 = vmatpush1.msra.mxu0 0.0
      %320 = vmatprep.subr.mxu0 0.0
      %321 = vmatpush1.msra.mxu0 0.0
      %322 = vmatprep.subr.mxu0 0.0
      %323 = vmatpush1.msra.mxu0 0.0
      %324 = vmatprep.subr.mxu0 0.0
      %325 = vmatpush1.msra.mxu0 0.0
      %326 = vmatprep.subr.mxu0 0.0
      %327 = vmatpush1.msra.mxu0 0.0
      %328 = vmatprep.subr.mxu0 0.0
      %329 = vmatpush1.msra.mxu0 0.0
      %330 = vmatprep.subr.mxu0 0.0
      %331 = vmatpush1.msra.mxu0 0.0
      %332 = vmatprep.subr.mxu0 0.0
      %333 = vmatpush1.msra.mxu0 0.0
      %334 = vmatprep.subr.mxu0 0.0
      %335 = vmatpush1.msra.mxu0 0.0
      %336 = vmatprep.subr.mxu0 0.0
      %337 = vmatpush1.msra.mxu0 0.0
      %338 = vmatprep.subr.mxu0 0.0
      %339 = vmatpush1.msra.mxu0 0.0
      %340 = vmatprep.subr.mxu0 0.0
      %341 = vmatpush1.msra.mxu0 0.0
      %342 = vmatprep.subr.mxu0 0.0
      %343 = vmatpush1.msra.mxu0 0.0
      %344 = vmatprep.subr.mxu0 0.0
      %345 = vmatpush1.msra.mxu0 0.0
      %346 = vmatprep.mubr.f32.mxu0 0.0
      %347 = vmatmul.mubr.f32.gmra.mrb[0].mxu0 %v147
      %v348 = vpop.f32.mrb[0].mxu0
      %v349 = vadd.f32 %v280, %v348
      %v350 = vpop.f32.mrb[0].mxu0
      %351 = vmatprep.mubr.f32.mxu0 0.0
      %352 = vmatmul.mubr.f32.gmra.mrb[0].mxu0 %v148
      %v353 = vpop.f32.mrb[0].mxu0
      %v354 = vadd.f32 %v280, %v353
      %v355 = vpop.f32.mrb[0].mxu0
      %356 = vmatprep.mubr.f32.mxu0 0.0
      %357 = vmatmul.mubr.f32.gmra.mrb[0].mxu0 %v149
      %v358 = vpop.f32.mrb[0].mxu0
      %v359 = vadd.f32 %v280, %v358
      %v360 = vpop.f32.mrb[0].mxu0
      %361 = vmatprep.mubr.f32.mxu0 0.0
      %362 = vmatmul.mubr.f32.gmra.mrb[0].mxu0 %v150
      %v363 = vpop.f32.mrb[0].mxu0
      %v364 = vadd.f32 %v280, %v363
      %v365 = vpop.f32.mrb[0].mxu0
      %366 = vdwg.mxu0
      %s367 = smul.u32 0, 32
      %s368 = scalar_lea.vmem [#allocation2], %s367
      %369 = vst [vmem:[%s368] sm:$0xff] %v241
      %370 = vst [vmem:[%s368 + $0x8] sm:$0xff] %v246
      %371 = vst [vmem:[%s368 + $0x10] sm:$0xff] %v251
      %372 = vst [vmem:[%s368 + $0x18] sm:$0xff] %v256
      %s373 = scalar_lea.vmem [#allocation3], %s367
      %374 = vst [vmem:[%s373] sm:$0xff] %v349
      %375 = vst [vmem:[%s373 + $0x8] sm:$0xff] %v354
      %376 = vst [vmem:[%s373 + $0x10] sm:$0xff] %v359
      %377 = vst [vmem:[%s373 + $0x18] sm:$0xff] %v364
    $region77: #{cross_attention_forward.1} parent=1 // pred_fallthru
      _
    %p378 = scmp.eq.s32.totalorder 0, 0
    // Predicated region
    $region78: #{cross_attention_forward.1} parent=1 // pred_check
      %p379 = pneg %p378
    $region79: #{cross_attention_forward.1} parent=1 // pred_check_branch
      %381 = sbr.rel (%p379) target = $region81
    $region80: #{cross_attention_forward.1} parent=1 // pred_region
      %v382 = vld [vmem:[#allocation8] sm:$0xff]
      %v383 = vld [vmem:[#allocation8 + $0x8] sm:$0xff]
      %v384 = vld [vmem:[#allocation13] sm:$0xff]
      %v385 = vld [vmem:[#allocation13 + $0x8] sm:$0xff]
      %v386 = vld [vmem:[#allocation13 + $0x10] sm:$0xff]
      %v387 = vld [vmem:[#allocation13 + $0x18] sm:$0xff]
      %v388 = vld [vmem:[#allocation13 + $0x20] sm:$0xff]
      %v389 = vld [vmem:[#allocation13 + $0x28] sm:$0xff]
      %v390 = vld [vmem:[#allocation13 + $0x30] sm:$0xff]
      %v391 = vld [vmem:[#allocation13 + $0x38] sm:$0xff]
      %v392 = vld [vmem:[#allocation13 + $0x40] sm:$0xff]
      %v393 = vld [vmem:[#allocation13 + $0x48] sm:$0xff]
      %v394 = vld [vmem:[#allocation13 + $0x50] sm:$0xff]
      %v395 = vld [vmem:[#allocation13 + $0x58] sm:$0xff]
      %v396 = vld [vmem:[#allocation13 + $0x60] sm:$0xff]
      %v397 = vld [vmem:[#allocation13 + $0x68] sm:$0xff]
      %v398 = vld [vmem:[#allocation13 + $0x70] sm:$0xff]
      %v399 = vld [vmem:[#allocation13 + $0x78] sm:$0xff]
      %v400 = vld [vmem:[#allocation14] sm:$0x1]
      %v402 = vlaneseq
      %v403 = vshrl.u32 %v402, 7
      %v404 = vsub.s32 0, %v403
      %v405 = vrot.slane %v400, %v404
      %407 = vmatprep.subr.mxu0 0.0
      %408 = vmatpush1.msra.mxu0 %v384
      %409 = vmatprep.subr.mxu0 0.0
      %410 = vmatpush1.msra.mxu0 %v385
      %411 = vmatprep.subr.mxu0 0.0
      %412 = vmatpush1.msra.mxu0 %v386
      %413 = vmatprep.subr.mxu0 0.0
      %414 = vmatpush1.msra.mxu0 %v387
      %415 = vmatprep.subr.mxu0 0.0
      %416 = vmatpush1.msra.mxu0 %v388
      %417 = vmatprep.subr.mxu0 0.0
      %418 = vmatpush1.msra.mxu0 %v389
      %419 = vmatprep.subr.mxu0 0.0
      %420 = vmatpush1.msra.mxu0 %v390
      %421 = vmatprep.subr.mxu0 0.0
      %422 = vmatpush1.msra.mxu0 %v391
      %423 = vmatprep.subr.mxu0 0.0
      %424 = vmatpush1.msra.mxu0 %v392
      %425 = vmatprep.subr.mxu0 0.0
      %426 = vmatpush1.msra.mxu0 %v393
      %427 = vmatprep.subr.mxu0 0.0
      %428 = vmatpush1.msra.mxu0 %v394
      %429 = vmatprep.subr.mxu0 0.0
      %430 = vmatpush1.msra.mxu0 %v395
      %431 = vmatprep.subr.mxu0 0.0
      %432 = vmatpush1.msra.mxu0 %v396
      %433 = vmatprep.subr.mxu0 0.0
      %434 = vmatpush1.msra.mxu0 %v397
      %435 = vmatprep.subr.mxu0 0.0
      %436 = vmatpush1.msra.mxu0 %v398
      %437 = vmatprep.subr.mxu0 0.0
      %438 = vmatpush1.msra.mxu0 %v399
      %439 = vmatprep.subr.mxu0 0.0
      %440 = vmatpush1.msra.mxu0 0.0
      %441 = vmatprep.subr.mxu0 0.0
      %442 = vmatpush1.msra.mxu0 0.0
      %443 = vmatprep.subr.mxu0 0.0
      %444 = vmatpush1.msra.mxu0 0.0
      %445 = vmatprep.subr.mxu0 0.0
      %446 = vmatpush1.msra.mxu0 0.0
      %447 = vmatprep.subr.mxu0 0.0
      %448 = vmatpush1.msra.mxu0 0.0
      %449 = vmatprep.subr.mxu0 0.0
      %450 = vmatpush1.msra.mxu0 0.0
      %451 = vmatprep.subr.mxu0 0.0
      %452 = vmatpush1.msra.mxu0 0.0
      %453 = vmatprep.subr.mxu0 0.0
      %454 = vmatpush1.msra.mxu0 0.0
      %455 = vmatprep.subr.mxu0 0.0
      %456 = vmatpush1.msra.mxu0 0.0
      %457 = vmatprep.subr.mxu0 0.0
      %458 = vmatpush1.msra.mxu0 0.0
      %459 = vmatprep.subr.mxu0 0.0
      %460 = vmatpush1.msra.mxu0 0.0
      %461 = vmatprep.subr.mxu0 0.0
      %462 = vmatpush1.msra.mxu0 0.0
      %463 = vmatprep.subr.mxu0 0.0
      %464 = vmatpush1.msra.mxu0 0.0
      %465 = vmatprep.subr.mxu0 0.0
      %466 = vmatpush1.msra.mxu0 0.0
      %467 = vmatprep.subr.mxu0 0.0
      %468 = vmatpush1.msra.mxu0 0.0
      %469 = vmatprep.subr.mxu0 0.0
      %470 = vmatpush1.msra.mxu0 0.0
      %471 = vmatprep.mubr.f32.mxu0 0.0
      %472 = vmatmul.mubr.f32.gmra.mrb[0].mxu0 %v382
      %v473 = vpop.f32.mrb[0].mxu0
      %v474 = vadd.f32 %v405, %v473
      %v475 = vpop.f32.mrb[0].mxu0
      %476 = vmatprep.mubr.f32.mxu0 0.0
      %477 = vmatmul.mubr.f32.gmra.mrb[0].mxu0 %v383
      %v478 = vpop.f32.mrb[0].mxu0
      %v479 = vadd.f32 %v405, %v478
      %v480 = vpop.f32.mrb[0].mxu0
      %481 = vdwg.mxu0
      %v482 = vmul.f32 %v474, 0.088388346
      %v483 = vmul.f32 %v479, 0.088388346
      %484 = vst [vmem:[#allocation4] sm:$0xff] %v482
      %485 = vst [vmem:[#allocation4 + $0x8] sm:$0xff] %v483
      %vm486 = vcmask 7168
      %487 = vst.msk [vmem:[#allocation5] sm:$0xff] %vm486, -3.4028235e+38
      %488 = vst.msk [vmem:[#allocation5 + $0x8] sm:$0xff] %vm486, -3.4028235e+38
      %489 = vst.msk [vmem:[#allocation6] sm:$0xff] %vm486, 0.0
      %490 = vst.msk [vmem:[#allocation6 + $0x8] sm:$0xff] %vm486, 0.0
      %491 = vst [vmem:[#allocation7] sm:$0xff] 0.0
      %492 = vst [vmem:[#allocation7 + $0x8] sm:$0xff] 0.0
    $region81: #{cross_attention_forward.1} parent=1 // pred_fallthru
      _
    %s493 = smul.u32 0, 32
    %s494 = scalar_lea.vmem [#allocation2], %s493
    %v495 = vld [vmem:[%s494] sm:$0xff]
    %v496 = vld [vmem:[%s494 + $0x8] sm:$0xff]
    %v497 = vld [vmem:[%s494 + $0x10] sm:$0xff]
    %v498 = vld [vmem:[%s494 + $0x18] sm:$0xff]
    %s499 = scalar_lea.vmem [#allocation3], %s493
    %v500 = vld [vmem:[%s499] sm:$0xff]
    %v501 = vld [vmem:[%s499 + $0x8] sm:$0xff]
    %v502 = vld [vmem:[%s499 + $0x10] sm:$0xff]
    %v503 = vld [vmem:[%s499 + $0x18] sm:$0xff]
    %v504 = vld [vmem:[#allocation4] sm:$0xff]
    %v505 = vld [vmem:[#allocation4 + $0x8] sm:$0xff]
    %506 = vmatprep.subr.mxu0 0.0
    %507 = vmatpush1.xpose.msra.mxu0 %v495
    %508 = vmatprep.subr.mxu0 0.0
    %509 = vmatpush1.xpose.msra.mxu0 %v496
    %510 = vmatprep.subr.mxu0 0.0
    %511 = vmatpush1.xpose.msra.mxu0 0.0
    %512 = vmatprep.subr.mxu0 0.0
    %513 = vmatpush1.xpose.msra.mxu0 0.0
    %514 = vmatprep.subr.mxu0 0.0
    %515 = vmatpush1.xpose.msra.mxu0 0.0
    %516 = vmatprep.subr.mxu0 0.0
    %517 = vmatpush1.xpose.msra.mxu0 0.0
    %518 = vmatprep.subr.mxu0 0.0
    %519 = vmatpush1.xpose.msra.mxu0 0.0
    %520 = vmatprep.subr.mxu0 0.0
    %521 = vmatpush1.xpose.msra.mxu0 0.0
    %522 = vmatprep.subr.mxu0 0.0
    %523 = vmatpush1.xpose.msra.mxu0 0.0
    %524 = vmatprep.subr.mxu0 0.0
    %525 = vmatpush1.xpose.msra.mxu0 0.0
    %526 = vmatprep.subr.mxu0 0.0
    %527 = vmatpush1.xpose.msra.mxu0 0.0
    %528 = vmatprep.subr.mxu0 0.0
    %529 = vmatpush1.xpose.msra.mxu0 0.0
    %530 = vmatprep.subr.mxu0 0.0
    %531 = vmatpush1.xpose.msra.mxu0 0.0
    %532 = vmatprep.subr.mxu0 0.0
    %533 = vmatpush1.xpose.msra.mxu0 0.0
    %534 = vmatprep.subr.mxu0 0.0
    %535 = vmatpush1.xpose.msra.mxu0 0.0
    %536 = vmatprep.subr.mxu0 0.0
    %537 = vmatpush1.xpose.msra.mxu0 0.0
    %538 = vmatprep.subr.mxu0 0.0
    %539 = vmatpush1.xpose.msra.mxu0 0.0
    %540 = vmatprep.subr.mxu0 0.0
    %541 = vmatpush1.xpose.msra.mxu0 0.0
    %542 = vmatprep.subr.mxu0 0.0
    %543 = vmatpush1.xpose.msra.mxu0 0.0
    %544 = vmatprep.subr.mxu0 0.0
    %545 = vmatpush1.xpose.msra.mxu0 0.0
    %546 = vmatprep.subr.mxu0 0.0
    %547 = vmatpush1.xpose.msra.mxu0 0.0
    %548 = vmatprep.subr.mxu0 0.0
    %549 = vmatpush1.xpose.msra.mxu0 0.0
    %550 = vmatprep.subr.mxu0 0.0
    %551 = vmatpush1.xpose.msra.mxu0 0.0
    %552 = vmatprep.subr.mxu0 0.0
    %553 = vmatpush1.xpose.msra.mxu0 0.0
    %554 = vmatprep.subr.mxu0 0.0
    %555 = vmatpush1.xpose.msra.mxu0 0.0
    %556 = vmatprep.subr.mxu0 0.0
    %557 = vmatpush1.xpose.msra.mxu0 0.0
    %558 = vmatprep.subr.mxu0 0.0
    %559 = vmatpush1.xpose.msra.mxu0 0.0
    %560 = vmatprep.subr.mxu0 0.0
    %561 = vmatpush1.xpose.msra.mxu0 0.0
    %562 = vmatprep.subr.mxu0 0.0
    %563 = vmatpush1.xpose.msra.mxu0 0.0
    %564 = vmatprep.subr.mxu0 0.0
    %565 = vmatpush1.xpose.msra.mxu0 0.0
    %566 = vmatprep.subr.mxu0 0.0
    %567 = vmatpush1.xpose.msra.mxu0 0.0
    %568 = vmatprep.subr.mxu0 0.0
    %569 = vmatpush1.xpose.msra.mxu0 0.0
    %570 = vmatprep.mubr.f32.mxu0 0.0
    %571 = vmatmul.mubr.f32.gmra.mrb[0].mxu0 %v504
    %v572 = vpop.f32.mrb[0].mxu0
    %v573 = vadd.f32 0.0, %v572
    %v574 = vpop.f32.mrb[0].mxu0
    %575 = vdwg.mxu0
    %576 = vmatprep.subr.mxu0 0.0
    %577 = vmatpush1.xpose.msra.mxu0 %v497
    %578 = vmatprep.subr.mxu0 0.0
    %579 = vmatpush1.xpose.msra.mxu0 %v498
    %580 = vmatprep.subr.mxu0 0.0
    %581 = vmatpush1.xpose.msra.mxu0 0.0
    %582 = vmatprep.subr.mxu0 0.0
    %583 = vmatpush1.xpose.msra.mxu0 0.0
    %584 = vmatprep.subr.mxu0 0.0
    %585 = vmatpush1.xpose.msra.mxu0 0.0
    %586 = vmatprep.subr.mxu0 0.0
    %587 = vmatpush1.xpose.msra.mxu0 0.0
    %588 = vmatprep.subr.mxu0 0.0
    %589 = vmatpush1.xpose.msra.mxu0 0.0
    %590 = vmatprep.subr.mxu0 0.0
    %591 = vmatpush1.xpose.msra.mxu0 0.0
    %592 = vmatprep.subr.mxu0 0.0
    %593 = vmatpush1.xpose.msra.mxu0 0.0
    %594 = vmatprep.subr.mxu0 0.0
    %595 = vmatpush1.xpose.msra.mxu0 0.0
    %596 = vmatprep.subr.mxu0 0.0
    %597 = vmatpush1.xpose.msra.mxu0 0.0
    %598 = vmatprep.subr.mxu0 0.0
    %599 = vmatpush1.xpose.msra.mxu0 0.0
    %600 = vmatprep.subr.mxu0 0.0
    %601 = vmatpush1.xpose.msra.mxu0 0.0
    %602 = vmatprep.subr.mxu0 0.0
    %603 = vmatpush1.xpose.msra.mxu0 0.0
    %604 = vmatprep.subr.mxu0 0.0
    %605 = vmatpush1.xpose.msra.mxu0 0.0
    %606 = vmatprep.subr.mxu0 0.0
    %607 = vmatpush1.xpose.msra.mxu0 0.0
    %608 = vmatprep.subr.mxu0 0.0
    %609 = vmatpush1.xpose.msra.mxu0 0.0
    %610 = vmatprep.subr.mxu0 0.0
    %611 = vmatpush1.xpose.msra.mxu0 0.0
    %612 = vmatprep.subr.mxu0 0.0
    %613 = vmatpush1.xpose.msra.mxu0 0.0
    %614 = vmatprep.subr.mxu0 0.0
    %615 = vmatpush1.xpose.msra.mxu0 0.0
    %616 = vmatprep.subr.mxu0 0.0
    %617 = vmatpush1.xpose.msra.mxu0 0.0
    %618 = vmatprep.subr.mxu0 0.0
    %619 = vmatpush1.xpose.msra.mxu0 0.0
    %620 = vmatprep.subr.mxu0 0.0
    %621 = vmatpush1.xpose.msra.mxu0 0.0
    %622 = vmatprep.subr.mxu0 0.0
    %623 = vmatpush1.xpose.msra.mxu0 0.0
    %624 = vmatprep.subr.mxu0 0.0
    %625 = vmatpush1.xpose.msra.mxu0 0.0
    %626 = vmatprep.subr.mxu0 0.0
    %627 = vmatpush1.xpose.msra.mxu0 0.0
    %628 = vmatprep.subr.mxu0 0.0
    %629 = vmatpush1.xpose.msra.mxu0 0.0
    %630 = vmatprep.subr.mxu0 0.0
    %631 = vmatpush1.xpose.msra.mxu0 0.0
    %632 = vmatprep.subr.mxu0 0.0
    %633 = vmatpush1.xpose.msra.mxu0 0.0
    %634 = vmatprep.subr.mxu0 0.0
    %635 = vmatpush1.xpose.msra.mxu0 0.0
    %636 = vmatprep.subr.mxu0 0.0
    %637 = vmatpush1.xpose.msra.mxu0 0.0
    %638 = vmatprep.subr.mxu0 0.0
    %639 = vmatpush1.xpose.msra.mxu0 0.0
    %640 = vmatprep.mubr.f32.mxu0 0.0
    %641 = vmatmul.mubr.f32.gmra.mrb[0].mxu0 %v505
    %v642 = vpop.f32.mrb[0].mxu0
    %v643 = vadd.f32 0.0, %v642
    %v644 = vpop.f32.mrb[0].mxu0
    %645 = vdwg.mxu0
    %v646 = vld [vmem:[%s9] sm:$0x1]
    %v647 = vld [vmem:[%s9 + $0x1] sm:$0x1]
    %vm648 = vcmp.eq.f32.partialorder %v646, 0.0
    %vm649 = vcmp.eq.f32.partialorder %v647, 0.0
    %v650 = vsel %vm648, 1, 0
    %v651 = vsel %vm649, 1, 0
    %v652 = vlaneseq
    %v653 = vshrl.u32 %v652, 7
    %v654 = vsub.s32 0, %v653
    %v655 = vrot.slane %v650, %v654
    %v656 = vlaneseq
    %v657 = vshrl.u32 %v656, 7
    %v658 = vsub.s32 0, %v657
    %v659 = vrot.slane %v651, %v658
    %vm660 = vcmp.eq.s32.totalorder %v655, 1
    %vm661 = vcmp.eq.s32.totalorder %v659, 1
    %v662 = vsel %vm660, -1e+30, %v573
    %v663 = vsel %vm661, -1e+30, %v643
    %v664 = vld [vmem:[#allocation5] sm:$0xff]
    %v665 = vld [vmem:[#allocation5 + $0x8] sm:$0xff]
    %vm666 = vcmask 130048
    %v667 = vsel %vm666, %v662, -inf
    %668 = vmax.xlane.f32.xlu0 %v667
    %v669 = vpop.xlane.xlu0 %668
    %v670 = vsel %vm666, %v663, -inf
    %671 = vmax.xlane.f32.xlu0 %v670
    %v672 = vpop.xlane.xlu0 %671
    %v673 = vmax.f32 %v664, %v669
    %v674 = vmax.f32 %v665, %v672
    %v675 = vsub.f32 %v664, %v673
    %v676 = vsub.f32 %v665, %v674
    %v677 = vmul.f32 %v675, 1.442695
    %v678 = vpow.pop %v677
    %v679 = vmul.f32 %v676, 1.442695
    %v680 = vpow.pop %v679
    %682 = vset.pattern.permute.xlu0 0
    %683 = vperm.xlu0 %682, %v673
    %v684 = vpop.permute.xlu0 %683
    %687 = vset.pattern.permute.xlu0 0
    %688 = vperm.xlu0 %687, %v674
    %v689 = vpop.permute.xlu0 %688
    %v691 = vsub.f32 %v662, %v684
    %v692 = vsub.f32 %v663, %v689
    %v693 = vmul.f32 %v691, 1.442695
    %v694 = vpow.pop %v693
    %v695 = vmul.f32 %v692, 1.442695
    %v696 = vpow.pop %v695
    %v697 = vld [vmem:[#allocation6] sm:$0xff]
    %v698 = vld [vmem:[#allocation6 + $0x8] sm:$0xff]
    %v699 = vmul.f32 %v678, %v697
    %v700 = vmul.f32 %v680, %v698
    %v701 = vsel %vm666, %v694, 0.0
    %702 = vadd.xlane.f32.xlu0 %v701
    %v703 = vpop.xlane.xlu0 %702
    %v704 = vsel %vm666, %v696, 0.0
    %705 = vadd.xlane.f32.xlu0 %v704
    %v706 = vpop.xlane.xlu0 %705
    %v707 = vadd.f32 %v699, %v703
    %v708 = vadd.f32 %v700, %v706
    %vm709 = vcmask 7168
    %710 = vst.msk [vmem:[#allocation6] sm:$0xff] %vm709, %v707
    %711 = vst.msk [vmem:[#allocation6 + $0x8] sm:$0xff] %vm709, %v708
    %v712 = vld [vmem:[#allocation7] sm:$0xff]
    %v713 = vld [vmem:[#allocation7 + $0x8] sm:$0xff]
    %715 = vset.pattern.permute.xlu0 0
    %716 = vperm.xlu0 %715, %v678
    %v717 = vpop.permute.xlu0 %716
    %720 = vset.pattern.permute.xlu0 0
    %721 = vperm.xlu0 %720, %v680
    %v722 = vpop.permute.xlu0 %721
    %v724 = vmul.f32 %v717, %v712
    %v725 = vmul.f32 %v722, %v713
    %v727 = vsel %vm666, %v694, 0
    %729 = vmatprep.subr.mxu0 0.0
    %730 = vmatpush1.msra.mxu0 %v500
    %731 = vmatprep.subr.mxu0 0.0
    %732 = vmatpush1.msra.mxu0 %v501
    %733 = vmatprep.subr.mxu0 0.0
    %734 = vmatpush1.msra.mxu0 0.0
    %735 = vmatprep.subr.mxu0 0.0
    %736 = vmatpush1.msra.mxu0 0.0
    %737 = vmatprep.subr.mxu0 0.0
    %738 = vmatpush1.msra.mxu0 0.0
    %739 = vmatprep.subr.mxu0 0.0
    %740 = vmatpush1.msra.mxu0 0.0
    %741 = vmatprep.subr.mxu0 0.0
    %742 = vmatpush1.msra.mxu0 0.0
    %743 = vmatprep.subr.mxu0 0.0
    %744 = vmatpush1.msra.mxu0 0.0
    %745 = vmatprep.subr.mxu0 0.0
    %746 = vmatpush1.msra.mxu0 0.0
    %747 = vmatprep.subr.mxu0 0.0
    %748 = vmatpush1.msra.mxu0 0.0
    %749 = vmatprep.subr.mxu0 0.0
    %750 = vmatpush1.msra.mxu0 0.0
    %751 = vmatprep.subr.mxu0 0.0
    %752 = vmatpush1.msra.mxu0 0.0
    %753 = vmatprep.subr.mxu0 0.0
    %754 = vmatpush1.msra.mxu0 0.0
    %755 = vmatprep.subr.mxu0 0.0
    %756 = vmatpush1.msra.mxu0 0.0
    %757 = vmatprep.subr.mxu0 0.0
    %758 = vmatpush1.msra.mxu0 0.0
    %759 = vmatprep.subr.mxu0 0.0
    %760 = vmatpush1.msra.mxu0 0.0
    %761 = vmatprep.subr.mxu0 0.0
    %762 = vmatpush1.msra.mxu0 0.0
    %763 = vmatprep.subr.mxu0 0.0
    %764 = vmatpush1.msra.mxu0 0.0
    %765 = vmatprep.subr.mxu0 0.0
    %766 = vmatpush1.msra.mxu0 0.0
    %767 = vmatprep.subr.mxu0 0.0
    %768 = vmatpush1.msra.mxu0 0.0
    %769 = vmatprep.subr.mxu0 0.0
    %770 = vmatpush1.msra.mxu0 0.0
    %771 = vmatprep.subr.mxu0 0.0
    %772 = vmatpush1.msra.mxu0 0.0
    %773 = vmatprep.subr.mxu0 0.0
    %774 = vmatpush1.msra.mxu0 0.0
    %775 = vmatprep.subr.mxu0 0.0
    %776 = vmatpush1.msra.mxu0 0.0
    %777 = vmatprep.subr.mxu0 0.0
    %778 = vmatpush1.msra.mxu0 0.0
    %779 = vmatprep.subr.mxu0 0.0
    %780 = vmatpush1.msra.mxu0 0.0
    %781 = vmatprep.subr.mxu0 0.0
    %782 = vmatpush1.msra.mxu0 0.0
    %783 = vmatprep.subr.mxu0 0.0
    %784 = vmatpush1.msra.mxu0 0.0
    %785 = vmatprep.subr.mxu0 0.0
    %786 = vmatpush1.msra.mxu0 0.0
    %787 = vmatprep.subr.mxu0 0.0
    %788 = vmatpush1.msra.mxu0 0.0
    %789 = vmatprep.subr.mxu0 0.0
    %790 = vmatpush1.msra.mxu0 0.0
    %791 = vmatprep.subr.mxu0 0.0
    %792 = vmatpush1.msra.mxu0 0.0
    %793 = vmatprep.mubr.f32.mxu0 0.0
    %794 = vmatmul.mubr.f32.gmra.mrb[0].mxu0 %v727
    %v795 = vpop.f32.mrb[0].mxu0
    %v796 = vadd.f32 0.0, %v795
    %v797 = vpop.f32.mrb[0].mxu0
    %798 = vdwg.mxu0
    %v800 = vsel %vm666, %v696, 0
    %802 = vmatprep.subr.mxu0 0.0
    %803 = vmatpush1.msra.mxu0 %v502
    %804 = vmatprep.subr.mxu0 0.0
    %805 = vmatpush1.msra.mxu0 %v503
    %806 = vmatprep.subr.mxu0 0.0
    %807 = vmatpush1.msra.mxu0 0.0
    %808 = vmatprep.subr.mxu0 0.0
    %809 = vmatpush1.msra.mxu0 0.0
    %810 = vmatprep.subr.mxu0 0.0
    %811 = vmatpush1.msra.mxu0 0.0
    %812 = vmatprep.subr.mxu0 0.0
    %813 = vmatpush1.msra.mxu0 0.0
    %814 = vmatprep.subr.mxu0 0.0
    %815 = vmatpush1.msra.mxu0 0.0
    %816 = vmatprep.subr.mxu0 0.0
    %817 = vmatpush1.msra.mxu0 0.0
    %818 = vmatprep.subr.mxu0 0.0
    %819 = vmatpush1.msra.mxu0 0.0
    %820 = vmatprep.subr.mxu0 0.0
    %821 = vmatpush1.msra.mxu0 0.0
    %822 = vmatprep.subr.mxu0 0.0
    %823 = vmatpush1.msra.mxu0 0.0
    %824 = vmatprep.subr.mxu0 0.0
    %825 = vmatpush1.msra.mxu0 0.0
    %826 = vmatprep.subr.mxu0 0.0
    %827 = vmatpush1.msra.mxu0 0.0
    %828 = vmatprep.subr.mxu0 0.0
    %829 = vmatpush1.msra.mxu0 0.0
    %830 = vmatprep.subr.mxu0 0.0
    %831 = vmatpush1.msra.mxu0 0.0
    %832 = vmatprep.subr.mxu0 0.0
    %833 = vmatpush1.msra.mxu0 0.0
    %834 = vmatprep.subr.mxu0 0.0
    %835 = vmatpush1.msra.mxu0 0.0
    %836 = vmatprep.subr.mxu0 0.0
    %837 = vmatpush1.msra.mxu0 0.0
    %838 = vmatprep.subr.mxu0 0.0
    %839 = vmatpush1.msra.mxu0 0.0
    %840 = vmatprep.subr.mxu0 0.0
    %841 = vmatpush1.msra.mxu0 0.0
    %842 = vmatprep.subr.mxu0 0.0
    %843 = vmatpush1.msra.mxu0 0.0
    %844 = vmatprep.subr.mxu0 0.0
    %845 = vmatpush1.msra.mxu0 0.0
    %846 = vmatprep.subr.mxu0 0.0
    %847 = vmatpush1.msra.mxu0 0.0
    %848 = vmatprep.subr.mxu0 0.0
    %849 = vmatpush1.msra.mxu0 0.0
    %850 = vmatprep.subr.mxu0 0.0
    %851 = vmatpush1.msra.mxu0 0.0
    %852 = vmatprep.subr.mxu0 0.0
    %853 = vmatpush1.msra.mxu0 0.0
    %854 = vmatprep.subr.mxu0 0.0
    %855 = vmatpush1.msra.mxu0 0.0
    %856 = vmatprep.subr.mxu0 0.0
    %857 = vmatpush1.msra.mxu0 0.0
    %858 = vmatprep.subr.mxu0 0.0
    %859 = vmatpush1.msra.mxu0 0.0
    %860 = vmatprep.subr.mxu0 0.0
    %861 = vmatpush1.msra.mxu0 0.0
    %862 = vmatprep.subr.mxu0 0.0
    %863 = vmatpush1.msra.mxu0 0.0
    %864 = vmatprep.subr.mxu0 0.0
    %865 = vmatpush1.msra.mxu0 0.0
    %866 = vmatprep.mubr.f32.mxu0 0.0
    %867 = vmatmul.mubr.f32.gmra.mrb[0].mxu0 %v800
    %v868 = vpop.f32.mrb[0].mxu0
    %v869 = vadd.f32 0.0, %v868
    %v870 = vpop.f32.mrb[0].mxu0
    %871 = vdwg.mxu0
    %v872 = vadd.f32 %v724, %v796
    %v873 = vadd.f32 %v725, %v869
    %874 = vst [vmem:[#allocation7] sm:$0xff] %v872
    %875 = vst [vmem:[#allocation7 + $0x8] sm:$0xff] %v873
    %876 = vst.msk [vmem:[#allocation5] sm:$0xff] %vm709, %v673
    %877 = vst.msk [vmem:[#allocation5 + $0x8] sm:$0xff] %vm709, %v674
    // Predicated region
    $region82: #{cross_attention_forward.1} parent=1 // pred_check
      %p878 = pneg %p378
    $region83: #{cross_attention_forward.1} parent=1 // pred_check_branch
      %880 = sbr.rel (%p878) target = $region85
    $region84: #{cross_attention_forward.1} parent=1 // pred_region
      %v881 = vld [vmem:[#allocation7] sm:$0xff]
      %v882 = vld [vmem:[#allocation7 + $0x8] sm:$0xff]
      %v883 = vld [vmem:[#allocation6] sm:$0xff]
      %v884 = vld [vmem:[#allocation6 + $0x8] sm:$0xff]
      %v885 = vrcp.pop %v883
      %v886 = vrcp.pop %v884
      %888 = vset.pattern.permute.xlu0 0
      %889 = vperm.xlu0 %888, %v885
      %v890 = vpop.permute.xlu0 %889
      %893 = vset.pattern.permute.xlu0 0
      %894 = vperm.xlu0 %893, %v886
      %v895 = vpop.permute.xlu0 %894
      %v897 = vmul.f32 %v881, %v890
      %v898 = vmul.f32 %v882, %v895
      %v899 = vld [vmem:[#allocation19] sm:$0xff]
      %v900 = vld [vmem:[#allocation19 + $0x8] sm:$0xff]
      %v901 = vld [vmem:[#allocation19 + $0x10] sm:$0xff]
      %v902 = vld [vmem:[#allocation19 + $0x18] sm:$0xff]
      %v903 = vld [vmem:[#allocation19 + $0x20] sm:$0xff]
      %v904 = vld [vmem:[#allocation19 + $0x28] sm:$0xff]
      %v905 = vld [vmem:[#allocation19 + $0x30] sm:$0xff]
      %v906 = vld [vmem:[#allocation19 + $0x38] sm:$0xff]
      %v907 = vld [vmem:[#allocation19 + $0x40] sm:$0xff]
      %v908 = vld [vmem:[#allocation19 + $0x48] sm:$0xff]
      %v909 = vld [vmem:[#allocation19 + $0x50] sm:$0xff]
      %v910 = vld [vmem:[#allocation19 + $0x58] sm:$0xff]
      %v911 = vld [vmem:[#allocation19 + $0x60] sm:$0xff]
      %v912 = vld [vmem:[#allocation19 + $0x68] sm:$0xff]
      %v913 = vld [vmem:[#allocation19 + $0x70] sm:$0xff]
      %v914 = vld [vmem:[#allocation19 + $0x78] sm:$0xff]
      %v915 = vld [vmem:[#allocation20] sm:$0x1]
      %v917 = vlaneseq
      %v918 = vshrl.u32 %v917, 7
      %v919 = vsub.s32 0, %v918
      %v920 = vrot.slane %v915, %v919
      %922 = vmatprep.subr.mxu0 0.0
      %923 = vmatpush1.msra.mxu0 %v899
      %924 = vmatprep.subr.mxu0 0.0
      %925 = vmatpush1.msra.mxu0 %v900
      %926 = vmatprep.subr.mxu0 0.0
      %927 = vmatpush1.msra.mxu0 %v901
      %928 = vmatprep.subr.mxu0 0.0
      %929 = vmatpush1.msra.mxu0 %v902
      %930 = vmatprep.subr.mxu0 0.0
      %931 = vmatpush1.msra.mxu0 %v903
      %932 = vmatprep.subr.mxu0 0.0
      %933 = vmatpush1.msra.mxu0 %v904
      %934 = vmatprep.subr.mxu0 0.0
      %935 = vmatpush1.msra.mxu0 %v905
      %936 = vmatprep.subr.mxu0 0.0
      %937 = vmatpush1.msra.mxu0 %v906
      %938 = vmatprep.subr.mxu0 0.0
      %939 = vmatpush1.msra.mxu0 %v907
      %940 = vmatprep.subr.mxu0 0.0
      %941 = vmatpush1.msra.mxu0 %v908
      %942 = vmatprep.subr.mxu0 0.0
      %943 = vmatpush1.msra.mxu0 %v909
      %944 = vmatprep.subr.mxu0 0.0
      %945 = vmatpush1.msra.mxu0 %v910
      %946 = vmatprep.subr.mxu0 0.0
      %947 = vmatpush1.msra.mxu0 %v911
      %948 = vmatprep.subr.mxu0 0.0
      %949 = vmatpush1.msra.mxu0 %v912
      %950 = vmatprep.subr.mxu0 0.0
      %951 = vmatpush1.msra.mxu0 %v913
      %952 = vmatprep.subr.mxu0 0.0
      %953 = vmatpush1.msra.mxu0 %v914
      %954 = vmatprep.subr.mxu0 0.0
      %955 = vmatpush1.msra.mxu0 0.0
      %956 = vmatprep.subr.mxu0 0.0
      %957 = vmatpush1.msra.mxu0 0.0
      %958 = vmatprep.subr.mxu0 0.0
      %959 = vmatpush1.msra.mxu0 0.0
      %960 = vmatprep.subr.mxu0 0.0
      %961 = vmatpush1.msra.mxu0 0.0
      %962 = vmatprep.subr.mxu0 0.0
      %963 = vmatpush1.msra.mxu0 0.0
      %964 = vmatprep.subr.mxu0 0.0
      %965 = vmatpush1.msra.mxu0 0.0
      %966 = vmatprep.subr.mxu0 0.0
      %967 = vmatpush1.msra.mxu0 0.0
      %968 = vmatprep.subr.mxu0 0.0
      %969 = vmatpush1.msra.mxu0 0.0
      %970 = vmatprep.subr.mxu0 0.0
      %971 = vmatpush1.msra.mxu0 0.0
      %972 = vmatprep.subr.mxu0 0.0
      %973 = vmatpush1.msra.mxu0 0.0
      %974 = vmatprep.subr.mxu0 0.0
      %975 = vmatpush1.msra.mxu0 0.0
      %976 = vmatprep.subr.mxu0 0.0
      %977 = vmatpush1.msra.mxu0 0.0
      %978 = vmatprep.subr.mxu0 0.0
      %979 = vmatpush1.msra.mxu0 0.0
      %980 = vmatprep.subr.mxu0 0.0
      %981 = vmatpush1.msra.mxu0 0.0
      %982 = vmatprep.subr.mxu0 0.0
      %983 = vmatpush1.msra.mxu0 0.0
      %984 = vmatprep.subr.mxu0 0.0
      %985 = vmatpush1.msra.mxu0 0.0
      %986 = vmatprep.mubr.f32.mxu0 0.0
      %987 = vmatmul.mubr.f32.gmra.mrb[0].mxu0 %v897
      %v988 = vpop.f32.mrb[0].mxu0
      %v989 = vadd.f32 %v920, %v988
      %v990 = vpop.f32.mrb[0].mxu0
      %991 = vmatprep.mubr.f32.mxu0 0.0
      %992 = vmatmul.mubr.f32.gmra.mrb[0].mxu0 %v898
      %v993 = vpop.f32.mrb[0].mxu0
      %v994 = vadd.f32 %v920, %v993
      %v995 = vpop.f32.mrb[0].mxu0
      %996 = vdwg.mxu0
      %997 = vst [vmem:[#allocation22] sm:$0xff] %v989
      %998 = vst [vmem:[#allocation22 + $0x8] sm:$0xff] %v994
    $region85: #{cross_attention_forward.1} parent=1 // pred_fallthru
      _
    // Predicated region
    $region86: #{cross_attention_forward.1} parent=1 // pred_check
      _
    $region87: #{cross_attention_forward.1} parent=1 // pred_check_branch
      %1000 = sbr.rel (0) target = $region89
    $region88: #{cross_attention_forward.1} parent=1 // pred_region
      %s1002 = ssub.s32 256, 256
      %1003 = vsyncadd [#allocation10], %s1002
      %s1004 = sshll.u32 [#allocation22], 4
      %s1005 = int_to_ptr.vmem [resolvable:$true] %s1004
      %1010 = dma.vmem_to_hbm [thread:$0]  %s1005, 256, %s10, [#allocation10], 128, 128, 8
    $region89: #{cross_attention_forward.1} parent=1 // pred_fallthru
      _
    // Predicated region
    $region90: #{cross_attention_forward.1} parent=1 // pred_check
      _
    $region91: #{cross_attention_forward.1} parent=1 // pred_check_branch
      %1012 = sbr.rel (0) target = $region93
    $region92: #{cross_attention_forward.1} parent=1 // pred_region
      %1013 = dma.done [#allocation10], 256
    $region93: #{cross_attention_forward.1} parent=1 // pred_fallthru
      _
    %1014 = vsyncpa [#allocation9], 1
    %1015 = vsyncpa [#allocation12], 1
    %1016 = vsyncpa [#allocation15], 1
    %1017 = vsyncpa [#allocation18], 1
    %1018 = vsyncpa [#allocation21], 1
    %1019 = vsyncpa [#allocation10], 1

</llo_original>
